<compile_context>
chip_gen: v7x
topology: tpu7x:2x2x1
jax: 0.10.0
libtpu: 0.0.40
codegen_flags: <defaults>
</compile_context>

<pallas_src>
import functools
import math

import jax
import jax.numpy as jnp
import numpy as np
from jax.experimental import pallas as pl
from jax.experimental.pallas import tpu as pltpu


# Rows of the packed per-layer "small" parameter block (all [E]-wide, f32).
_SMALL_ROWS = ("fa1_b", "fa2_b", "ln1_w", "ln1_b", "fb1_b", "fb2_b", "ln2_w", "ln2_b")


def transformer_kernel(x_ref, qkv_w_ref, qkv_b_ref, fa1_w_ref, fa2_w_ref,
                       fb1_w_ref, fb2_w_ref, small_ref,
                       o_ref, h_ref, att_ref, *, n_heads, eps=1e-5):
    """One grid step = one (batch-block, layer) pair.

    Grid = (num_batch_blocks, n_layers). The layer axis is innermost and
    "arbitrary", so the activation stays resident in the VMEM scratch `h_ref`
    across layers (initialized from x at layer 0). The batch axis is "parallel".
    """
    l = pl.program_id(1)
    Bb, T, E = x_ref.shape
    H = n_heads
    dh = E // H
    R = Bb * T
    f32 = jnp.float32
    bf16 = jnp.bfloat16

    @pl.when(l == 0)
    def _init_activation():
        h_ref[...] = x_ref[...].reshape(R, E)

    x = h_ref[...]                       # [R, E] f32 resident activation
    xb = x.astype(bf16)

    small = small_ref[...]               # [8, E] f32 packed per-layer params
    fa1_b, fa2_b = small[0:1], small[1:2]
    ln1_w, ln1_b = small[2:3], small[3:4]
    fb1_b, fb2_b = small[4:5], small[5:6]
    ln2_w, ln2_b = small[6:7], small[7:8]

    def layernorm(v, w, b):
        mu = jnp.mean(v, axis=-1, keepdims=True)
        var = jnp.mean((v - mu) ** 2, axis=-1, keepdims=True)
        return (v - mu) * jax.lax.rsqrt(var + eps) * w + b

    # ---- attention -------------------------------------------------------
    # qkv_w columns are pre-permuted (host side) into contiguous Q | K | V
    # slabs, heads contiguous inside each slab.
    qkv = jnp.dot(xb, qkv_w_ref[...], preferred_element_type=f32) + qkv_b_ref[...]

    inv_scale = 1.0 / math.sqrt(dh)

    def head_major(col0):
        # [R, 3E] -> [Bb*H, T, dh]: static slices stacked along a NEW leading
        # (batch) axis -> one batched MXU issue stream, no lane concatenate,
        # no non-minormost transposes.
        return jnp.stack(
            [qkv[b * T:(b + 1) * T, col0 + h * dh: col0 + (h + 1) * dh]
             for b in range(Bb) for h in range(H)], axis=0)

    qg = (head_major(0) * inv_scale).astype(bf16)     # scale folded into q
    kg = head_major(E).astype(bf16)
    vg = head_major(2 * E).astype(bf16)

    G = Bb * H
    s = jnp.einsum("gqd,gkd->gqk", qg, kg, preferred_element_type=f32)   # [G,T,T]
    row = jax.lax.broadcasted_iota(jnp.int32, (G, T, T), 1)
    col = jax.lax.broadcasted_iota(jnp.int32, (G, T, T), 2)
    s = jnp.where(col <= row, s, -jnp.inf)
    m = jnp.max(s, axis=-1, keepdims=True)
    e = jnp.exp(s - m)
    p = e * pl.reciprocal(jnp.sum(e, axis=-1, keepdims=True), approx=True)
    og = jnp.einsum("gqk,gkd->gqd", p.astype(bf16), vg,
                    preferred_element_type=f32)                           # [G,T,dh]

    # Scatter head outputs back to the [R, E] layout via a VMEM scratch at
    # static column offsets (instead of a lane-direction concatenate).
    for b in range(Bb):
        for h in range(H):
            att_ref[b * T:(b + 1) * T, h * dh:(h + 1) * dh] = og[b * H + h]
    att = att_ref[...].astype(bf16)

    # attention's internal FFN (linear -> relu -> linear)
    a = jnp.dot(att, fa1_w_ref[...], preferred_element_type=f32) + fa1_b
    a = jnp.maximum(a, 0.0).astype(bf16)
    a = jnp.dot(a, fa2_w_ref[...], preferred_element_type=f32) + fa2_b

    # TODO(synk): torch dropout defaults to training mode; here dropout == identity (p = 0).

    # ---- block: residual + LN1, FFN, residual + LN2 ------------------------
    out1 = layernorm(a + x, ln1_w, ln1_b)

    f = jnp.dot(out1.astype(bf16), fb1_w_ref[...], preferred_element_type=f32) + fb1_b
    f = jnp.maximum(f, 0.0).astype(bf16)
    f = jnp.dot(f, fb2_w_ref[...], preferred_element_type=f32) + fb2_b

    h_new = layernorm(out1 + f, ln2_w, ln2_b)
    h_ref[...] = h_new
    o_ref[...] = h_new.reshape(Bb, T, E)


def transformer_forward(x, packed, n_heads, *, batch_block=None):
    B, T, E = x.shape
    L = packed["qkv_w"].shape[0]
    Bb = batch_block if batch_block is not None else B
    assert B % Bb == 0 and E % n_heads == 0
    nb = B // Bb

    kernel = functools.partial(transformer_kernel, n_heads=n_heads)
    wmap = lambda b, l: (l, 0, 0)     # pick layer l's weight slab

    in_specs = [
        pl.BlockSpec((Bb, T, E), lambda b, l: (b, 0, 0)),        # x (resident across layers)
        pl.BlockSpec((None, E, 3 * E), wmap),                    # qkv_w (bf16, slab-permuted)
        pl.BlockSpec((None, 1, 3 * E), wmap),                    # qkv_b (f32, slab-permuted)
        pl.BlockSpec((None, E, E), wmap),                        # fa1_w (bf16)
        pl.BlockSpec((None, E, E), wmap),                        # fa2_w (bf16)
        pl.BlockSpec((None, E, E), wmap),                        # fb1_w (bf16)
        pl.BlockSpec((None, E, E), wmap),                        # fb2_w (bf16)
        pl.BlockSpec((None, len(_SMALL_ROWS), E), wmap),         # packed biases / LN params
    ]
    out_specs = pl.BlockSpec((Bb, T, E), lambda b, l: (b, 0, 0))

    return pl.pallas_call(
        kernel,
        grid=(nb, L),
        in_specs=in_specs,
        out_specs=out_specs,
        out_shape=jax.ShapeDtypeStruct((B, T, E), jnp.float32),
        scratch_shapes=[pltpu.VMEM((Bb * T, E), jnp.float32),    # resident activation
                        pltpu.VMEM((Bb * T, E), jnp.float32)],   # attention head scatter
        compiler_params=pltpu.CompilerParams(
            dimension_semantics=("parallel", "arbitrary")),
    )(x, packed["qkv_w"], packed["qkv_b"], packed["fa1_w"], packed["fa2_w"],
      packed["fb1_w"], packed["fb2_w"], packed["small"])


# --------------------- deterministic parameter init --------------------------
def init_block_params(key, E):
    ks = jax.random.split(key, 12)
    w = lambda k, i, o: jax.random.normal(k, (i, o), jnp.float32) * 0.05
    b = lambda k, o: jax.random.normal(k, (1, o), jnp.float32) * 0.02
    return {
        "qkv_w": w(ks[0], E, 3 * E), "qkv_b": b(ks[1], 3 * E),
        "fa1_w": w(ks[2], E, E), "fa1_b": b(ks[3], E),
        "fa2_w": w(ks[4], E, E), "fa2_b": b(ks[5], E),
        "ln1_w": jnp.ones((1, E), jnp.float32),
        "ln1_b": jnp.zeros((1, E), jnp.float32),
        "fb1_w": w(ks[6], E, E), "fb1_b": b(ks[7], E),
        "fb2_w": w(ks[8], E, E), "fb2_b": b(ks[9], E),
        "ln2_w": 1.0 + 0.1 * jax.random.normal(ks[10], (1, E), jnp.float32),
        "ln2_b": 0.02 * jax.random.normal(ks[11], (1, E), jnp.float32),
    }


def qkv_slab_permutation(E, n_heads):
    # torch layout of qkv output columns: [head][q|k|v][d_head]  ->  Q|K|V slabs.
    dh = E // n_heads
    idx = np.arange(3 * E).reshape(n_heads, 3, dh)
    return np.concatenate([idx[:, 0, :].ravel(), idx[:, 1, :].ravel(), idx[:, 2, :].ravel()])


def pack_params(layer_params, n_heads):
    E = layer_params[0]["qkv_w"].shape[0]
    perm = qkv_slab_permutation(E, n_heads)
    stack = lambda name: jnp.stack([p[name] for p in layer_params], axis=0)
    small = jnp.stack(
        [jnp.concatenate([p[name] for name in _SMALL_ROWS], axis=0) for p in layer_params],
        axis=0)                                                     # [L, 8, E] f32
    return {
        "qkv_w": stack("qkv_w")[:, :, perm].astype(jnp.bfloat16),   # [L, E, 3E]
        "qkv_b": stack("qkv_b")[:, :, perm],                        # [L, 1, 3E] f32
        "fa1_w": stack("fa1_w").astype(jnp.bfloat16),
        "fa2_w": stack("fa2_w").astype(jnp.bfloat16),
        "fb1_w": stack("fb1_w").astype(jnp.bfloat16),
        "fb2_w": stack("fb2_w").astype(jnp.bfloat16),
        "small": small,
    }


# --------------------- pure-JAX reference (mirrors PyTorch) ------------------
def _bf16_dot(a, w):
    # Same numerics as the kernel: bf16 MXU inputs, f32 accumulation.
    return jnp.dot(a.astype(jnp.bfloat16), w.astype(jnp.bfloat16),
                   preferred_element_type=jnp.float32)


def ref_layernorm(v, w, b, eps=1e-5):
    mu = jnp.mean(v, axis=-1, keepdims=True)
    var = jnp.mean((v - mu) ** 2, axis=-1, keepdims=True)
    return (v - mu) * jax.lax.rsqrt(var + eps) * w[0] + b[0]


def ref_block(x, p, n_heads):
    # Exact torch structure: interleaved qkv layout, per-head split, scale after mask.
    B, T, E = x.shape
    dh = E // n_heads
    bf16 = jnp.bfloat16
    qkv = _bf16_dot(x, p["qkv_w"]) + p["qkv_b"][0]                       # [B,T,3E]
    qkv = qkv.reshape(B, T, n_heads, 3 * dh).transpose(0, 2, 1, 3)        # [B,H,T,3dh]
    q, k, v = qkv[..., :dh], qkv[..., dh:2 * dh], qkv[..., 2 * dh:]
    mask = jnp.tril(jnp.ones((T, T), dtype=bool))
    s = jnp.einsum("bhtd,bhsd->bhts", q.astype(bf16), k.astype(bf16),
                   preferred_element_type=jnp.float32)
    s = jnp.where(mask, s, -jnp.inf) / np.sqrt(dh)
    att = jax.nn.softmax(s, axis=-1)
    o = jnp.einsum("bhts,bhsd->bhtd", att.astype(bf16), v.astype(bf16),
                   preferred_element_type=jnp.float32)
    o = o.transpose(0, 2, 1, 3).reshape(B, T, E)
    o = jnp.maximum(_bf16_dot(o, p["fa1_w"]) + p["fa1_b"][0], 0.0)
    o = _bf16_dot(o, p["fa2_w"]) + p["fa2_b"][0]
    out1 = ref_layernorm(o + x, p["ln1_w"], p["ln1_b"])
    f = jnp.maximum(_bf16_dot(out1, p["fb1_w"]) + p["fb1_b"][0], 0.0)
    f = _bf16_dot(f, p["fb2_w"]) + p["fb2_b"][0]
    return ref_layernorm(out1 + f, p["ln2_w"], p["ln2_b"])


def ref_transformer(x, layer_params, n_heads):
    out = x
    for p in layer_params:
        out = ref_block(out, p, n_heads)
    return out


if __name__ == "__main__":
    # Transformer(embedding_dim=32, n_layers=2, n_heads=4, dropout=0.0)
    B, T, E, H, L = 2, 8, 32, 4, 2

    key = jax.random.PRNGKey(0)
    k_x, k_p = jax.random.split(key)
    x = jax.random.normal(k_x, (B, T, E), jnp.float32)
    layer_params = [init_block_params(k, E) for k in jax.random.split(k_p, L)]
    packed = pack_params(layer_params, H)

    out = transformer_forward(x, packed, H, batch_block=B)
    out = jax.block_until_ready(out)

    ref = jax.block_until_ready(ref_transformer(x, layer_params, H))
    np.testing.assert_allclose(np.asarray(out), np.asarray(ref), rtol=2e-2, atol=2e-2)

    print("KERNEL_OK")
</pallas_src>

<mosaic_0001>
module attributes {stable_mosaic.version = 11 : i64} {
  func.func @transformer_kernel(%arg0: i32, %arg1: i32, %arg2: memref<2x8x32xf32, #tpu.memory_space<vmem>>, %arg3: memref<1x32x96xbf16, #tpu.memory_space<vmem>>, %arg4: memref<1x1x96xf32, #tpu.memory_space<vmem>>, %arg5: memref<1x32x32xbf16, #tpu.memory_space<vmem>>, %arg6: memref<1x32x32xbf16, #tpu.memory_space<vmem>>, %arg7: memref<1x32x32xbf16, #tpu.memory_space<vmem>>, %arg8: memref<1x32x32xbf16, #tpu.memory_space<vmem>>, %arg9: memref<1x8x32xf32, #tpu.memory_space<vmem>>, %arg10: memref<2x8x32xf32, #tpu.memory_space<vmem>>, %arg11: memref<16x32xf32, #tpu.memory_space<vmem>>, %arg12: memref<16x32xf32, #tpu.memory_space<vmem>>) attributes {dimension_semantics = [#tpu.dimension_semantics<parallel>, #tpu.dimension_semantics<arbitrary>], iteration_bounds = array<i64: 1, 2>, scalar_prefetch = 0 : i64, scratch_operands = 2 : i64, tpu.core_type = #tpu.core_type<tc>, window_params = [{transform_indices = @transform_0, window_bounds = array<i64: 2, 8, 32>}, {transform_indices = @transform_1, window_bounds = array<i64: 1, 32, 96>}, {transform_indices = @transform_2, window_bounds = array<i64: 1, 1, 96>}, {transform_indices = @transform_3, window_bounds = array<i64: 1, 32, 32>}, {transform_indices = @transform_4, window_bounds = array<i64: 1, 32, 32>}, {transform_indices = @transform_5, window_bounds = array<i64: 1, 32, 32>}, {transform_indices = @transform_6, window_bounds = array<i64: 1, 32, 32>}, {transform_indices = @transform_7, window_bounds = array<i64: 1, 8, 32>}, {transform_indices = @transform_8, window_bounds = array<i64: 2, 8, 32>}]} {
    %c0_i32 = arith.constant 0 : i32
    %0 = arith.cmpi eq, %arg1, %c0_i32 : i32
    %1 = arith.extui %0 : i1 to i32
    %c0_i32_0 = arith.constant 0 : i32
    %2 = arith.cmpi ne, %1, %c0_i32_0 : i32
    scf.if %2 {
      %c0_65 = arith.constant 0 : index
      %c0_66 = arith.constant 0 : index
      %c0_67 = arith.constant 0 : index
      %198 = vector.load %arg2[%c0_65, %c0_66, %c0_67] : memref<2x8x32xf32, #tpu.memory_space<vmem>>, vector<2x8x32xf32>
      %199 = vector.shape_cast %198 : vector<2x8x32xf32> to vector<16x32xf32>
      %c0_68 = arith.constant 0 : index
      %c0_69 = arith.constant 0 : index
      %200 = vector.load %arg11[%c0_68, %c0_69] : memref<16x32xf32, #tpu.memory_space<vmem>>, vector<16x32xf32>
      tpu.vector_store %arg11[%c0_68, %c0_69], %199 {strides = array<i32>} : memref<16x32xf32, #tpu.memory_space<vmem>>, vector<16x32xf32>,
    } else {
    }
    %c0 = arith.constant 0 : index
    %c0_1 = arith.constant 0 : index
    %3 = vector.load %arg11[%c0, %c0_1] : memref<16x32xf32, #tpu.memory_space<vmem>>, vector<16x32xf32>
    %4 = arith.truncf %3 : vector<16x32xf32> to vector<16x32xbf16>
    %c0_2 = arith.constant 0 : index
    %c0_3 = arith.constant 0 : index
    %c0_4 = arith.constant 0 : index
    %5 = vector.load %arg9[%c0_2, %c0_3, %c0_4] : memref<1x8x32xf32, #tpu.memory_space<vmem>>, vector<1x8x32xf32>
    %6 = vector.shape_cast %5 : vector<1x8x32xf32> to vector<8x32xf32>
    %7 = vector.extract_strided_slice %6 {offsets = [0, 0], sizes = [1, 32], strides = [1, 1]} : vector<8x32xf32> to vector<1x32xf32>
    %8 = vector.extract_strided_slice %6 {offsets = [1, 0], sizes = [1, 32], strides = [1, 1]} : vector<8x32xf32> to vector<1x32xf32>
    %9 = vector.extract_strided_slice %6 {offsets = [2, 0], sizes = [1, 32], strides = [1, 1]} : vector<8x32xf32> to vector<1x32xf32>
    %10 = vector.extract_strided_slice %6 {offsets = [3, 0], sizes = [1, 32], strides = [1, 1]} : vector<8x32xf32> to vector<1x32xf32>
    %11 = vector.extract_strided_slice %6 {offsets = [4, 0], sizes = [1, 32], strides = [1, 1]} : vector<8x32xf32> to vector<1x32xf32>
    %12 = vector.extract_strided_slice %6 {offsets = [5, 0], sizes = [1, 32], strides = [1, 1]} : vector<8x32xf32> to vector<1x32xf32>
    %13 = vector.extract_strided_slice %6 {offsets = [6, 0], sizes = [1, 32], strides = [1, 1]} : vector<8x32xf32> to vector<1x32xf32>
    %14 = vector.extract_strided_slice %6 {offsets = [7, 0], sizes = [1, 32], strides = [1, 1]} : vector<8x32xf32> to vector<1x32xf32>
    %c0_5 = arith.constant 0 : index
    %c0_6 = arith.constant 0 : index
    %c0_7 = arith.constant 0 : index
    %15 = vector.load %arg3[%c0_5, %c0_6, %c0_7] : memref<1x32x96xbf16, #tpu.memory_space<vmem>>, vector<1x32x96xbf16>
    %16 = vector.shape_cast %15 : vector<1x32x96xbf16> to vector<32x96xbf16>
    %cst = arith.constant dense<0.000000e+00> : vector<16x96xf32>
    %17 = tpu.matmul %4, %16, %cst {dimension_numbers = #tpu.dot_dimension_numbers<[1], [0], [0], [1], [0, 0, 1, 1], [], []>} : vector<16x32xbf16>, vector<32x96xbf16>, vector<16x96xf32> -> vector<16x96xf32>
    %c0_8 = arith.constant 0 : index
    %c0_9 = arith.constant 0 : index
    %c0_10 = arith.constant 0 : index
    %18 = vector.load %arg4[%c0_8, %c0_9, %c0_10] : memref<1x1x96xf32, #tpu.memory_space<vmem>>, vector<1x1x96xf32>
    %19 = vector.shape_cast %18 : vector<1x1x96xf32> to vector<1x96xf32>
    %20 = vector.broadcast %19 : vector<1x96xf32> to vector<16x96xf32>
    %21 = arith.addf %17, %20 : vector<16x96xf32>
    %22 = vector.extract_strided_slice %21 {offsets = [0, 0], sizes = [8, 8], strides = [1, 1]} : vector<16x96xf32> to vector<8x8xf32>
    %23 = vector.extract_strided_slice %21 {offsets = [0, 8], sizes = [8, 8], strides = [1, 1]} : vector<16x96xf32> to vector<8x8xf32>
    %24 = vector.extract_strided_slice %21 {offsets = [0, 16], sizes = [8, 8], strides = [1, 1]} : vector<16x96xf32> to vector<8x8xf32>
    %25 = vector.extract_strided_slice %21 {offsets = [0, 24], sizes = [8, 8], strides = [1, 1]} : vector<16x96xf32> to vector<8x8xf32>
    %26 = vector.extract_strided_slice %21 {offsets = [8, 0], sizes = [8, 8], strides = [1, 1]} : vector<16x96xf32> to vector<8x8xf32>
    %27 = vector.extract_strided_slice %21 {offsets = [8, 8], sizes = [8, 8], strides = [1, 1]} : vector<16x96xf32> to vector<8x8xf32>
    %28 = vector.extract_strided_slice %21 {offsets = [8, 16], sizes = [8, 8], strides = [1, 1]} : vector<16x96xf32> to vector<8x8xf32>
    %29 = vector.extract_strided_slice %21 {offsets = [8, 24], sizes = [8, 8], strides = [1, 1]} : vector<16x96xf32> to vector<8x8xf32>
    %30 = vector.shape_cast %22 : vector<8x8xf32> to vector<1x8x8xf32>
    %31 = vector.shape_cast %23 : vector<8x8xf32> to vector<1x8x8xf32>
    %32 = vector.shape_cast %24 : vector<8x8xf32> to vector<1x8x8xf32>
    %33 = vector.shape_cast %25 : vector<8x8xf32> to vector<1x8x8xf32>
    %34 = vector.shape_cast %26 : vector<8x8xf32> to vector<1x8x8xf32>
    %35 = vector.shape_cast %27 : vector<8x8xf32> to vector<1x8x8xf32>
    %36 = vector.shape_cast %28 : vector<8x8xf32> to vector<1x8x8xf32>
    %37 = vector.shape_cast %29 : vector<8x8xf32> to vector<1x8x8xf32>
    %38 = tpu.concatenate %30, %31, %32, %33, %34, %35, %36, %37 in 0 : vector<1x8x8xf32>, vector<1x8x8xf32>, vector<1x8x8xf32>, vector<1x8x8xf32>, vector<1x8x8xf32>, vector<1x8x8xf32>, vector<1x8x8xf32>, vector<1x8x8xf32> -> vector<8x8x8xf32>
    %cst_11 = arith.constant 0.353553385 : f32
    %39 = vector.broadcast %cst_11 : f32 to vector<8x8x8xf32>
    %40 = arith.mulf %38, %39 : vector<8x8x8xf32>
    %41 = arith.truncf %40 : vector<8x8x8xf32> to vector<8x8x8xbf16>
    %42 = vector.extract_strided_slice %21 {offsets = [0, 32], sizes = [8, 8], strides = [1, 1]} : vector<16x96xf32> to vector<8x8xf32>
    %43 = vector.extract_strided_slice %21 {offsets = [0, 40], sizes = [8, 8], strides = [1, 1]} : vector<16x96xf32> to vector<8x8xf32>
    %44 = vector.extract_strided_slice %21 {offsets = [0, 48], sizes = [8, 8], strides = [1, 1]} : vector<16x96xf32> to vector<8x8xf32>
    %45 = vector.extract_strided_slice %21 {offsets = [0, 56], sizes = [8, 8], strides = [1, 1]} : vector<16x96xf32> to vector<8x8xf32>
    %46 = vector.extract_strided_slice %21 {offsets = [8, 32], sizes = [8, 8], strides = [1, 1]} : vector<16x96xf32> to vector<8x8xf32>
    %47 = vector.extract_strided_slice %21 {offsets = [8, 40], sizes = [8, 8], strides = [1, 1]} : vector<16x96xf32> to vector<8x8xf32>
    %48 = vector.extract_strided_slice %21 {offsets = [8, 48], sizes = [8, 8], strides = [1, 1]} : vector<16x96xf32> to vector<8x8xf32>
    %49 = vector.extract_strided_slice %21 {offsets = [8, 56], sizes = [8, 8], strides = [1, 1]} : vector<16x96xf32> to vector<8x8xf32>
    %50 = vector.shape_cast %42 : vector<8x8xf32> to vector<1x8x8xf32>
    %51 = vector.shape_cast %43 : vector<8x8xf32> to vector<1x8x8xf32>
    %52 = vector.shape_cast %44 : vector<8x8xf32> to vector<1x8x8xf32>
    %53 = vector.shape_cast %45 : vector<8x8xf32> to vector<1x8x8xf32>
    %54 = vector.shape_cast %46 : vector<8x8xf32> to vector<1x8x8xf32>
    %55 = vector.shape_cast %47 : vector<8x8xf32> to vector<1x8x8xf32>
    %56 = vector.shape_cast %48 : vector<8x8xf32> to vector<1x8x8xf32>
    %57 = vector.shape_cast %49 : vector<8x8xf32> to vector<1x8x8xf32>
    %58 = tpu.concatenate %50, %51, %52, %53, %54, %55, %56, %57 in 0 : vector<1x8x8xf32>, vector<1x8x8xf32>, vector<1x8x8xf32>, vector<1x8x8xf32>, vector<1x8x8xf32>, vector<1x8x8xf32>, vector<1x8x8xf32>, vector<1x8x8xf32> -> vector<8x8x8xf32>
    %59 = arith.truncf %58 : vector<8x8x8xf32> to vector<8x8x8xbf16>
    %60 = vector.extract_strided_slice %21 {offsets = [0, 64], sizes = [8, 8], strides = [1, 1]} : vector<16x96xf32> to vector<8x8xf32>
    %61 = vector.extract_strided_slice %21 {offsets = [0, 72], sizes = [8, 8], strides = [1, 1]} : vector<16x96xf32> to vector<8x8xf32>
    %62 = vector.extract_strided_slice %21 {offsets = [0, 80], sizes = [8, 8], strides = [1, 1]} : vector<16x96xf32> to vector<8x8xf32>
    %63 = vector.extract_strided_slice %21 {offsets = [0, 88], sizes = [8, 8], strides = [1, 1]} : vector<16x96xf32> to vector<8x8xf32>
    %64 = vector.extract_strided_slice %21 {offsets = [8, 64], sizes = [8, 8], strides = [1, 1]} : vector<16x96xf32> to vector<8x8xf32>
    %65 = vector.extract_strided_slice %21 {offsets = [8, 72], sizes = [8, 8], strides = [1, 1]} : vector<16x96xf32> to vector<8x8xf32>
    %66 = vector.extract_strided_slice %21 {offsets = [8, 80], sizes = [8, 8], strides = [1, 1]} : vector<16x96xf32> to vector<8x8xf32>
    %67 = vector.extract_strided_slice %21 {offsets = [8, 88], sizes = [8, 8], strides = [1, 1]} : vector<16x96xf32> to vector<8x8xf32>
    %68 = vector.shape_cast %60 : vector<8x8xf32> to vector<1x8x8xf32>
    %69 = vector.shape_cast %61 : vector<8x8xf32> to vector<1x8x8xf32>
    %70 = vector.shape_cast %62 : vector<8x8xf32> to vector<1x8x8xf32>
    %71 = vector.shape_cast %63 : vector<8x8xf32> to vector<1x8x8xf32>
    %72 = vector.shape_cast %64 : vector<8x8xf32> to vector<1x8x8xf32>
    %73 = vector.shape_cast %65 : vector<8x8xf32> to vector<1x8x8xf32>
    %74 = vector.shape_cast %66 : vector<8x8xf32> to vector<1x8x8xf32>
    %75 = vector.shape_cast %67 : vector<8x8xf32> to vector<1x8x8xf32>
    %76 = tpu.concatenate %68, %69, %70, %71, %72, %73, %74, %75 in 0 : vector<1x8x8xf32>, vector<1x8x8xf32>, vector<1x8x8xf32>, vector<1x8x8xf32>, vector<1x8x8xf32>, vector<1x8x8xf32>, vector<1x8x8xf32>, vector<1x8x8xf32> -> vector<8x8x8xf32>
    %77 = arith.truncf %76 : vector<8x8x8xf32> to vector<8x8x8xbf16>
    "tpu.trace_start"() <{level = 10 : i32, message = "gqd,gkd->gqk"}> : () -> ()
    %cst_12 = arith.constant dense<0.000000e+00> : vector<8x8x8xf32>
    %78 = tpu.matmul %41, %59, %cst_12 {dimension_numbers = #tpu.dot_dimension_numbers<[2], [2], [1], [1], [0, 0, 0, 1, 1, 1], [0], [0]>} : vector<8x8x8xbf16>, vector<8x8x8xbf16>, vector<8x8x8xf32> -> vector<8x8x8xf32>
    "tpu.trace_stop"() : () -> ()
    %79 = tpu.iota {dimensions = array<i32: 1>} : vector<8x8x8xi32>
    %80 = tpu.iota {dimensions = array<i32: 2>} : vector<8x8x8xi32>
    %81 = arith.cmpi sle, %80, %79 : vector<8x8x8xi32>
    %cst_13 = arith.constant 0xFF800000 : f32
    %82 = vector.broadcast %cst_13 : f32 to vector<8x8x8xf32>
    %83 = arith.select %81, %78, %82 : vector<8x8x8xi1>, vector<8x8x8xf32>
    %cst_14 = arith.constant dense<0xFF800000> : vector<8x8xf32>
    %84 = vector.multi_reduction <maximumf>, %83, %cst_14 [2] : vector<8x8x8xf32> to vector<8x8xf32>
    %85 = vector.shape_cast %84 : vector<8x8xf32> to vector<8x8x1xf32>
    %86 = vector.broadcast %85 : vector<8x8x1xf32> to vector<8x8x8xf32>
    %87 = arith.subf %83, %86 : vector<8x8x8xf32>
    %88 = math.exp %87 : vector<8x8x8xf32>
    %cst_15 = arith.constant dense<0.000000e+00> : vector<8x8xf32>
    %89 = vector.multi_reduction <add>, %88, %cst_15 [2] : vector<8x8x8xf32> to vector<8x8xf32>
    %90 = vector.shape_cast %89 : vector<8x8xf32> to vector<8x8x1xf32>
    %91 = tpu.reciprocal %90 {approx = true} : vector<8x8x1xf32> -> vector<8x8x1xf32>
    %92 = vector.broadcast %91 : vector<8x8x1xf32> to vector<8x8x8xf32>
    %93 = arith.mulf %88, %92 : vector<8x8x8xf32>
    %94 = arith.truncf %93 : vector<8x8x8xf32> to vector<8x8x8xbf16>
    "tpu.trace_start"() <{level = 10 : i32, message = "gqk,gkd->gqd"}> : () -> ()
    %cst_16 = arith.constant dense<0.000000e+00> : vector<8x8x8xf32>
    %95 = tpu.matmul %94, %77, %cst_16 {dimension_numbers = #tpu.dot_dimension_numbers<[2], [1], [1], [2], [0, 0, 0, 1, 1, 2], [0], [0]>} : vector<8x8x8xbf16>, vector<8x8x8xbf16>, vector<8x8x8xf32> -> vector<8x8x8xf32>
    "tpu.trace_stop"() : () -> ()
    %96 = vector.extract_strided_slice %95 {offsets = [0, 0, 0], sizes = [1, 8, 8], strides = [1, 1, 1]} : vector<8x8x8xf32> to vector<1x8x8xf32>
    %97 = vector.shape_cast %96 : vector<1x8x8xf32> to vector<8x8xf32>
    %c0_17 = arith.constant 0 : index
    %c0_18 = arith.constant 0 : index
    %98 = vector.load %arg12[%c0_17, %c0_18] : memref<16x32xf32, #tpu.memory_space<vmem>>, vector<8x8xf32>
    tpu.vector_store %arg12[%c0_17, %c0_18], %97 {strides = array<i32>} : memref<16x32xf32, #tpu.memory_space<vmem>>, vector<8x8xf32>,
    %99 = vector.extract_strided_slice %95 {offsets = [1, 0, 0], sizes = [1, 8, 8], strides = [1, 1, 1]} : vector<8x8x8xf32> to vector<1x8x8xf32>
    %100 = vector.shape_cast %99 : vector<1x8x8xf32> to vector<8x8xf32>
    %c0_19 = arith.constant 0 : index
    %c8 = arith.constant 8 : index
    %101 = vector.load %arg12[%c0_19, %c8] : memref<16x32xf32, #tpu.memory_space<vmem>>, vector<8x8xf32>
    tpu.vector_store %arg12[%c0_19, %c8], %100 {strides = array<i32>} : memref<16x32xf32, #tpu.memory_space<vmem>>, vector<8x8xf32>,
    %102 = vector.extract_strided_slice %95 {offsets = [2, 0, 0], sizes = [1, 8, 8], strides = [1, 1, 1]} : vector<8x8x8xf32> to vector<1x8x8xf32>
    %103 = vector.shape_cast %102 : vector<1x8x8xf32> to vector<8x8xf32>
    %c0_20 = arith.constant 0 : index
    %c16 = arith.constant 16 : index
    %104 = vector.load %arg12[%c0_20, %c16] : memref<16x32xf32, #tpu.memory_space<vmem>>, vector<8x8xf32>
    tpu.vector_store %arg12[%c0_20, %c16], %103 {strides = array<i32>} : memref<16x32xf32, #tpu.memory_space<vmem>>, vector<8x8xf32>,
    %105 = vector.extract_strided_slice %95 {offsets = [3, 0, 0], sizes = [1, 8, 8], strides = [1, 1, 1]} : vector<8x8x8xf32> to vector<1x8x8xf32>
    %106 = vector.shape_cast %105 : vector<1x8x8xf32> to vector<8x8xf32>
    %c0_21 = arith.constant 0 : index
    %c24 = arith.constant 24 : index
    %107 = vector.load %arg12[%c0_21, %c24] : memref<16x32xf32, #tpu.memory_space<vmem>>, vector<8x8xf32>
    tpu.vector_store %arg12[%c0_21, %c24], %106 {strides = array<i32>} : memref<16x32xf32, #tpu.memory_space<vmem>>, vector<8x8xf32>,
    %108 = vector.extract_strided_slice %95 {offsets = [4, 0, 0], sizes = [1, 8, 8], strides = [1, 1, 1]} : vector<8x8x8xf32> to vector<1x8x8xf32>
    %109 = vector.shape_cast %108 : vector<1x8x8xf32> to vector<8x8xf32>
    %c8_22 = arith.constant 8 : index
    %c0_23 = arith.constant 0 : index
    %110 = vector.load %arg12[%c8_22, %c0_23] : memref<16x32xf32, #tpu.memory_space<vmem>>, vector<8x8xf32>
    tpu.vector_store %arg12[%c8_22, %c0_23], %109 {strides = array<i32>} : memref<16x32xf32, #tpu.memory_space<vmem>>, vector<8x8xf32>,
    %111 = vector.extract_strided_slice %95 {offsets = [5, 0, 0], sizes = [1, 8, 8], strides = [1, 1, 1]} : vector<8x8x8xf32> to vector<1x8x8xf32>
    %112 = vector.shape_cast %111 : vector<1x8x8xf32> to vector<8x8xf32>
    %c8_24 = arith.constant 8 : index
    %c8_25 = arith.constant 8 : index
    %113 = vector.load %arg12[%c8_24, %c8_25] : memref<16x32xf32, #tpu.memory_space<vmem>>, vector<8x8xf32>
    tpu.vector_store %arg12[%c8_24, %c8_25], %112 {strides = array<i32>} : memref<16x32xf32, #tpu.memory_space<vmem>>, vector<8x8xf32>,
    %114 = vector.extract_strided_slice %95 {offsets = [6, 0, 0], sizes = [1, 8, 8], strides = [1, 1, 1]} : vector<8x8x8xf32> to vector<1x8x8xf32>
    %115 = vector.shape_cast %114 : vector<1x8x8xf32> to vector<8x8xf32>
    %c8_26 = arith.constant 8 : index
    %c16_27 = arith.constant 16 : index
    %116 = vector.load %arg12[%c8_26, %c16_27] : memref<16x32xf32, #tpu.memory_space<vmem>>, vector<8x8xf32>
    tpu.vector_store %arg12[%c8_26, %c16_27], %115 {strides = array<i32>} : memref<16x32xf32, #tpu.memory_space<vmem>>, vector<8x8xf32>,
    %117 = vector.extract_strided_slice %95 {offsets = [7, 0, 0], sizes = [1, 8, 8], strides = [1, 1, 1]} : vector<8x8x8xf32> to vector<1x8x8xf32>
    %118 = vector.shape_cast %117 : vector<1x8x8xf32> to vector<8x8xf32>
    %c8_28 = arith.constant 8 : index
    %c24_29 = arith.constant 24 : index
    %119 = vector.load %arg12[%c8_28, %c24_29] : memref<16x32xf32, #tpu.memory_space<vmem>>, vector<8x8xf32>
    tpu.vector_store %arg12[%c8_28, %c24_29], %118 {strides = array<i32>} : memref<16x32xf32, #tpu.memory_space<vmem>>, vector<8x8xf32>,
    %c0_30 = arith.constant 0 : index
    %c0_31 = arith.constant 0 : index
    %120 = vector.load %arg12[%c0_30, %c0_31] : memref<16x32xf32, #tpu.memory_space<vmem>>, vector<16x32xf32>
    %121 = arith.truncf %120 : vector<16x32xf32> to vector<16x32xbf16>
    %c0_32 = arith.constant 0 : index
    %c0_33 = arith.constant 0 : index
    %c0_34 = arith.constant 0 : index
    %122 = vector.load %arg5[%c0_32, %c0_33, %c0_34] : memref<1x32x32xbf16, #tpu.memory_space<vmem>>, vector<1x32x32xbf16>
    %123 = vector.shape_cast %122 : vector<1x32x32xbf16> to vector<32x32xbf16>
    %cst_35 = arith.constant dense<0.000000e+00> : vector<16x32xf32>
    %124 = tpu.matmul %121, %123, %cst_35 {dimension_numbers = #tpu.dot_dimension_numbers<[1], [0], [0], [1], [0, 0, 1, 1], [], []>} : vector<16x32xbf16>, vector<32x32xbf16>, vector<16x32xf32> -> vector<16x32xf32>
    %125 = vector.broadcast %7 : vector<1x32xf32> to vector<16x32xf32>
    %126 = arith.addf %124, %125 : vector<16x32xf32>
    %cst_36 = arith.constant 0.000000e+00 : f32
    %127 = vector.broadcast %cst_36 : f32 to vector<16x32xf32>
    %128 = arith.maximumf %126, %127 : vector<16x32xf32>
    %129 = arith.truncf %128 : vector<16x32xf32> to vector<16x32xbf16>
    %c0_37 = arith.constant 0 : index
    %c0_38 = arith.constant 0 : index
    %c0_39 = arith.constant 0 : index
    %130 = vector.load %arg6[%c0_37, %c0_38, %c0_39] : memref<1x32x32xbf16, #tpu.memory_space<vmem>>, vector<1x32x32xbf16>
    %131 = vector.shape_cast %130 : vector<1x32x32xbf16> to vector<32x32xbf16>
    %cst_40 = arith.constant dense<0.000000e+00> : vector<16x32xf32>
    %132 = tpu.matmul %129, %131, %cst_40 {dimension_numbers = #tpu.dot_dimension_numbers<[1], [0], [0], [1], [0, 0, 1, 1], [], []>} : vector<16x32xbf16>, vector<32x32xbf16>, vector<16x32xf32> -> vector<16x32xf32>
    %133 = vector.broadcast %8 : vector<1x32xf32> to vector<16x32xf32>
    %134 = arith.addf %132, %133 : vector<16x32xf32>
    %135 = arith.addf %134, %3 : vector<16x32xf32>
    %cst_41 = arith.constant dense<0.000000e+00> : vector<16xf32>
    %136 = vector.multi_reduction <add>, %135, %cst_41 [1] : vector<16x32xf32> to vector<16xf32>
    %137 = vector.shape_cast %136 : vector<16xf32> to vector<16x1xf32>
    %cst_42 = arith.constant 3.200000e+01 : f32
    %138 = vector.broadcast %cst_42 : f32 to vector<16x1xf32>
    %139 = arith.divf %137, %138 : vector<16x1xf32>
    %140 = vector.broadcast %139 : vector<16x1xf32> to vector<16x32xf32>
    %141 = arith.subf %135, %140 : vector<16x32xf32>
    %142 = arith.mulf %141, %141 : vector<16x32xf32>
    %cst_43 = arith.constant dense<0.000000e+00> : vector<16xf32>
    %143 = vector.multi_reduction <add>, %142, %cst_43 [1] : vector<16x32xf32> to vector<16xf32>
    %144 = vector.shape_cast %143 : vector<16xf32> to vector<16x1xf32>
    %cst_44 = arith.constant 3.200000e+01 : f32
    %145 = vector.broadcast %cst_44 : f32 to vector<16x1xf32>
    %146 = arith.divf %144, %145 : vector<16x1xf32>
    %147 = vector.broadcast %139 : vector<16x1xf32> to vector<16x32xf32>
    %148 = arith.subf %135, %147 : vector<16x32xf32>
    %cst_45 = arith.constant 9.99999974E-6 : f32
    %149 = vector.broadcast %cst_45 : f32 to vector<16x1xf32>
    %150 = arith.addf %146, %149 : vector<16x1xf32>
    %151 = math.rsqrt %150 : vector<16x1xf32>
    %152 = vector.broadcast %151 : vector<16x1xf32> to vector<16x32xf32>
    %153 = arith.mulf %148, %152 : vector<16x32xf32>
    %154 = vector.broadcast %9 : vector<1x32xf32> to vector<16x32xf32>
    %155 = arith.mulf %153, %154 : vector<16x32xf32>
    %156 = vector.broadcast %10 : vector<1x32xf32> to vector<16x32xf32>
    %157 = arith.addf %155, %156 : vector<16x32xf32>
    %158 = arith.truncf %157 : vector<16x32xf32> to vector<16x32xbf16>
    %c0_46 = arith.constant 0 : index
    %c0_47 = arith.constant 0 : index
    %c0_48 = arith.constant 0 : index
    %159 = vector.load %arg7[%c0_46, %c0_47, %c0_48] : memref<1x32x32xbf16, #tpu.memory_space<vmem>>, vector<1x32x32xbf16>
    %160 = vector.shape_cast %159 : vector<1x32x32xbf16> to vector<32x32xbf16>
    %cst_49 = arith.constant dense<0.000000e+00> : vector<16x32xf32>
    %161 = tpu.matmul %158, %160, %cst_49 {dimension_numbers = #tpu.dot_dimension_numbers<[1], [0], [0], [1], [0, 0, 1, 1], [], []>} : vector<16x32xbf16>, vector<32x32xbf16>, vector<16x32xf32> -> vector<16x32xf32>
    %162 = vector.broadcast %11 : vector<1x32xf32> to vector<16x32xf32>
    %163 = arith.addf %161, %162 : vector<16x32xf32>
    %cst_50 = arith.constant 0.000000e+00 : f32
    %164 = vector.broadcast %cst_50 : f32 to vector<16x32xf32>
    %165 = arith.maximumf %163, %164 : vector<16x32xf32>
    %166 = arith.truncf %165 : vector<16x32xf32> to vector<16x32xbf16>
    %c0_51 = arith.constant 0 : index
    %c0_52 = arith.constant 0 : index
    %c0_53 = arith.constant 0 : index
    %167 = vector.load %arg8[%c0_51, %c0_52, %c0_53] : memref<1x32x32xbf16, #tpu.memory_space<vmem>>, vector<1x32x32xbf16>
    %168 = vector.shape_cast %167 : vector<1x32x32xbf16> to vector<32x32xbf16>
    %cst_54 = arith.constant dense<0.000000e+00> : vector<16x32xf32>
    %169 = tpu.matmul %166, %168, %cst_54 {dimension_numbers = #tpu.dot_dimension_numbers<[1], [0], [0], [1], [0, 0, 1, 1], [], []>} : vector<16x32xbf16>, vector<32x32xbf16>, vector<16x32xf32> -> vector<16x32xf32>
    %170 = vector.broadcast %12 : vector<1x32xf32> to vector<16x32xf32>
    %171 = arith.addf %169, %170 : vector<16x32xf32>
    %172 = arith.addf %157, %171 : vector<16x32xf32>
    %cst_55 = arith.constant dense<0.000000e+00> : vector<16xf32>
    %173 = vector.multi_reduction <add>, %172, %cst_55 [1] : vector<16x32xf32> to vector<16xf32>
    %174 = vector.shape_cast %173 : vector<16xf32> to vector<16x1xf32>
    %cst_56 = arith.constant 3.200000e+01 : f32
    %175 = vector.broadcast %cst_56 : f32 to vector<16x1xf32>
    %176 = arith.divf %174, %175 : vector<16x1xf32>
    %177 = vector.broadcast %176 : vector<16x1xf32> to vector<16x32xf32>
    %178 = arith.subf %172, %177 : vector<16x32xf32>
    %179 = arith.mulf %178, %178 : vector<16x32xf32>
    %cst_57 = arith.constant dense<0.000000e+00> : vector<16xf32>
    %180 = vector.multi_reduction <add>, %179, %cst_57 [1] : vector<16x32xf32> to vector<16xf32>
    %181 = vector.shape_cast %180 : vector<16xf32> to vector<16x1xf32>
    %cst_58 = arith.constant 3.200000e+01 : f32
    %182 = vector.broadcast %cst_58 : f32 to vector<16x1xf32>
    %183 = arith.divf %181, %182 : vector<16x1xf32>
    %184 = vector.broadcast %176 : vector<16x1xf32> to vector<16x32xf32>
    %185 = arith.subf %172, %184 : vector<16x32xf32>
    %cst_59 = arith.constant 9.99999974E-6 : f32
    %186 = vector.broadcast %cst_59 : f32 to vector<16x1xf32>
    %187 = arith.addf %183, %186 : vector<16x1xf32>
    %188 = math.rsqrt %187 : vector<16x1xf32>
    %189 = vector.broadcast %188 : vector<16x1xf32> to vector<16x32xf32>
    %190 = arith.mulf %185, %189 : vector<16x32xf32>
    %191 = vector.broadcast %13 : vector<1x32xf32> to vector<16x32xf32>
    %192 = arith.mulf %190, %191 : vector<16x32xf32>
    %193 = vector.broadcast %14 : vector<1x32xf32> to vector<16x32xf32>
    %194 = arith.addf %192, %193 : vector<16x32xf32>
    %c0_60 = arith.constant 0 : index
    %c0_61 = arith.constant 0 : index
    %195 = vector.load %arg11[%c0_60, %c0_61] : memref<16x32xf32, #tpu.memory_space<vmem>>, vector<16x32xf32>
    tpu.vector_store %arg11[%c0_60, %c0_61], %194 {strides = array<i32>} : memref<16x32xf32, #tpu.memory_space<vmem>>, vector<16x32xf32>,
    %196 = vector.shape_cast %194 : vector<16x32xf32> to vector<2x8x32xf32>
    %c0_62 = arith.constant 0 : index
    %c0_63 = arith.constant 0 : index
    %c0_64 = arith.constant 0 : index
    %197 = vector.load %arg10[%c0_62, %c0_63, %c0_64] : memref<2x8x32xf32, #tpu.memory_space<vmem>>, vector<2x8x32xf32>
    tpu.vector_store %arg10[%c0_62, %c0_63, %c0_64], %196 {strides = array<i32>} : memref<2x8x32xf32, #tpu.memory_space<vmem>>, vector<2x8x32xf32>,
    return
  }
  func.func @transform_0(%arg0: i32, %arg1: i32) -> (i32, i32, i32) {
    %c0_i32 = arith.constant 0 : i32
    %c0_i32_0 = arith.constant 0 : i32
    %c0_i32_1 = arith.constant 0 : i32
    return %arg0, %c0_i32, %c0_i32_0 : i32, i32, i32
  }
  func.func @transform_1(%arg0: i32, %arg1: i32) -> (i32, i32, i32) {
    %c0_i32 = arith.constant 0 : i32
    %c0_i32_0 = arith.constant 0 : i32
    %c0_i32_1 = arith.constant 0 : i32
    return %arg1, %c0_i32, %c0_i32_0 : i32, i32, i32
  }
  func.func @transform_2(%arg0: i32, %arg1: i32) -> (i32, i32, i32) {
    %c0_i32 = arith.constant 0 : i32
    %c0_i32_0 = arith.constant 0 : i32
    %c0_i32_1 = arith.constant 0 : i32
    return %arg1, %c0_i32, %c0_i32_0 : i32, i32, i32
  }
  func.func @transform_3(%arg0: i32, %arg1: i32) -> (i32, i32, i32) {
    %c0_i32 = arith.constant 0 : i32
    %c0_i32_0 = arith.constant 0 : i32
    %c0_i32_1 = arith.constant 0 : i32
    return %arg1, %c0_i32, %c0_i32_0 : i32, i32, i32
  }
  func.func @transform_4(%arg0: i32, %arg1: i32) -> (i32, i32, i32) {
    %c0_i32 = arith.constant 0 : i32
    %c0_i32_0 = arith.constant 0 : i32
    %c0_i32_1 = arith.constant 0 : i32
    return %arg1, %c0_i32, %c0_i32_0 : i32, i32, i32
  }
  func.func @transform_5(%arg0: i32, %arg1: i32) -> (i32, i32, i32) {
    %c0_i32 = arith.constant 0 : i32
    %c0_i32_0 = arith.constant 0 : i32
    %c0_i32_1 = arith.constant 0 : i32
    return %arg1, %c0_i32, %c0_i32_0 : i32, i32, i32
  }
  func.func @transform_6(%arg0: i32, %arg1: i32) -> (i32, i32, i32) {
    %c0_i32 = arith.constant 0 : i32
    %c0_i32_0 = arith.constant 0 : i32
    %c0_i32_1 = arith.constant 0 : i32
    return %arg1, %c0_i32, %c0_i32_0 : i32, i32, i32
  }
  func.func @transform_7(%arg0: i32, %arg1: i32) -> (i32, i32, i32) {
    %c0_i32 = arith.constant 0 : i32
    %c0_i32_0 = arith.constant 0 : i32
    %c0_i32_1 = arith.constant 0 : i32
    return %arg1, %c0_i32, %c0_i32_0 : i32, i32, i32
  }
  func.func @transform_8(%arg0: i32, %arg1: i32) -> (i32, i32, i32) {
    %c0_i32 = arith.constant 0 : i32
    %c0_i32_0 = arith.constant 0 : i32
    %c0_i32_1 = arith.constant 0 : i32
    return %arg0, %c0_i32, %c0_i32_0 : i32, i32, i32
  }
}

</mosaic_0001>

<llo_original>
// kernel: tpu_custom_call.1
$region0: #{tpu_custom_call.1}
  #allocation0 [shape = 'u32[]', space=smem, size = 0x4, offset = 0x4, fixed_abs, tag = 'smem constant byte address 0x4 - core index']
  #allocation1 [shape = 'u32[144,128]{1,0:T(1,128)}', space=vmem, size = 0x12000, scoped, tag = 'internal scratch']
  #allocation2 [shape = 'f32[16,32]{1,0:T(8,128)}', space=vmem, size = 0x2000, scoped, tag = 'scratch operand']
  #allocation3 [shape = 'f32[16,32]{1,0:T(8,128)}', space=vmem, size = 0x2000, scoped, tag = 'scratch operand']
  %s0 = inlined_call_operand.hbm [shape: f32[2,8,32], index: 0, kind: input, shape index: {}]
  %s1 = inlined_call_operand.hbm [shape: bf16[2,32,96], index: 1, kind: input, shape index: {}]
  %s2 = inlined_call_operand.vmem [shape: f32[2,1,96], index: 2, kind: input, shape index: {}]
  %s3 = inlined_call_operand.hbm [shape: bf16[2,32,32], index: 3, kind: input, shape index: {}]
  %s4 = inlined_call_operand.hbm [shape: bf16[2,32,32], index: 4, kind: input, shape index: {}]
  %s5 = inlined_call_operand.hbm [shape: bf16[2,32,32], index: 5, kind: input, shape index: {}]
  %s6 = inlined_call_operand.hbm [shape: bf16[2,32,32], index: 6, kind: input, shape index: {}]
  %s7 = inlined_call_operand.vmem [shape: f32[2,8,32], index: 7, kind: input, shape index: {}]
  %s8 = inlined_call_operand.hbm [shape: f32[2,8,32], index: 8, kind: output, shape index: {}]
  %s9 = sld [smem:[#allocation0]]
  $region93: #{tpu_custom_call.1} parent=0
    _
  %s11 = ssub.s32 1, %s9
  %s12 = scalar_select 0, %s11, %s9
  $region1: #{tpu_custom_call.1} parent=0
    #allocation4 [shape = 'u8[8192]{0}', space=vmem, size = 0x2000, scoped, tag = 'input window, operand 0, single buffered']
    #allocation5 [shape = 's32[2]{0}', space=sflag, size = 0x8, scoped, tag = 'scoped memory for tpu_custom_call.1']
    #allocation6 [shape = 's32[2]{0}', space=sflag, size = 0x8, scoped, tag = 'scoped memory for tpu_custom_call.1']
    #allocation7 [shape = 'u8[16384]{0}', space=vmem, size = 0x4000, scoped, tag = 'input window, operand 1']
    #allocation8 [shape = 's32[2]{0}', space=sflag, size = 0x8, scoped, tag = 'scoped memory for tpu_custom_call.1']
    #allocation9 [shape = 'u8[16384]{0}', space=vmem, size = 0x4000, scoped, tag = 'input window, operand 3']
    #allocation10 [shape = 'u8[16384]{0}', space=vmem, size = 0x4000, scoped, tag = 'input window, operand 4']
    #allocation11 [shape = 's32[2]{0}', space=sflag, size = 0x8, scoped, tag = 'scoped memory for tpu_custom_call.1']
    #allocation12 [shape = 'u8[16384]{0}', space=vmem, size = 0x4000, scoped, tag = 'input window, operand 5']
    #allocation13 [shape = 'u8[16384]{0}', space=vmem, size = 0x4000, scoped, tag = 'input window, operand 6']
    #allocation14 [shape = 's32[2]{0}', space=sflag, size = 0x8, scoped, tag = 'scoped memory for tpu_custom_call.1']
    #allocation15 [shape = 'u8[8192]{0}', space=vmem, size = 0x2000, scoped, tag = 'output window, operand 0, single buffered']
    %13 = vsyncpa [#allocation5], 0
    %14 = vsyncpa [#allocation8], 0
    %s15 = scalar_lea.sflag [#allocation8], 1
    %16 = vsyncpa %s15, 0
    %17 = vsyncpa [#allocation11], 0
    %s18 = scalar_lea.sflag [#allocation11], 1
    %19 = vsyncpa %s18, 0
    %20 = vsyncpa [#allocation14], 0
    %s21 = scalar_lea.sflag [#allocation14], 1
    %22 = vsyncpa %s21, 0
    %23 = vsyncpa [#allocation6], 0
    loop: start=0, step=1, limit=4
    $region2: #{tpu_custom_call.1} parent=1 // loop_pre_header
      _
    $region3: #{tpu_custom_call.1} parent=1 // loop_header
      %s25 = sphi 0, %s29
      %p26 = scmp.ge.s32.totalorder %s25, 4
      %s32 = sphi 0, %s44
      %s33 = sphi 0, %s40
      %s34 = sphi 0, %s32
      %s35 = sphi 0, %s33
      %s36 = sphi 0, %s34
      %s37 = sphi 0, %s35
      %s47 = sphi 0, %s49
      %s50 = sphi 0, %s47
      %s51 = sphi 0, %s50
      %s67 = sphi 0, %s51
      %s73 = sphi 0, %s75
      %s76 = sphi 0, %s73
      %s77 = sphi 0, %s76
      %s93 = sphi 0, %s77
      %s99 = sphi 0, %s101
      %s102 = sphi 0, %s99
      %s103 = sphi 0, %s102
      %s119 = sphi 0, %s103
      %s125 = sphi 0, %s127
      %s128 = sphi 0, %s125
      %s129 = sphi 0, %s128
      %s145 = sphi 0, %s129
      %s151 = sphi 0, %s153
      %s154 = sphi 0, %s151
      %s155 = sphi 0, %s154
      %s171 = sphi 0, %s155
      %s177 = sphi 0, %s179
      %s180 = sphi 0, %s177
      %s181 = sphi 0, %s180
      %s197 = sphi 0, %s181
      %s203 = sphi 0, %s205
      %s206 = sphi 0, %s203
      %s207 = sphi 0, %s206
      %s223 = sphi 0, %s207
      %s229 = sphi 0, %s231
      %s232 = sphi 0, %s229
      %s233 = sphi 0, %s232
      %s249 = sphi 0, %s233
      %s255 = sphi 0, %s257
      %s258 = sphi 0, %s255
      %s259 = sphi 0, %s258
      %s275 = sphi 0, %s259
    $region4: #{tpu_custom_call.1} parent=1 // loop_header_branch
      %28 = sbr.rel (%p26) target = $region8
    $region5: #{tpu_custom_call.1} parent=1 // loop_body
      %s30 = ssub.s32 %s25, 1
      %s31 = ssub.s32 %s25, 2
      %s38 = sadd.s32 1, %s33
      %p39 = scmp.ge.s32.totalorder %s38, 2
      %s40 = scalar_select %p39, 0, %s38
      %s41 = sadd.s32 1, %s32
      %s42 = scalar_select %p39, %s41, %s32
      %p43 = scmp.ge.s32.totalorder %s42, 1
      %s44 = scalar_select %p43, 0, %s42
      %s45 = ssub.s32 %s32, %s44
      %p46 = scmp.eq.s32.totalorder %s45, 0
      %s48 = sadd.s32 %s47, 1
      %s49 = scalar_select %p46, %s47, %s48
      %p52 = pneg %p46
      %p53 = scmp.eq.s32.totalorder %s25, 1
      %p54 = por %p52, %p53
      %p55 = scmp.ne.s32.totalorder %s47, %s50
      %p56 = scmp.eq.s32.totalorder %s25, 0
      %p57 = por %p55, %p56
      %p58 = scmp.ne.s32.totalorder %s47, %s50
      %p59 = scmp.eq.s32.totalorder %s30, 1
      %p60 = por %p58, %p59
      %p61 = scmp.ne.s32.totalorder %s50, %s51
      %p62 = scmp.eq.s32.totalorder %s30, 0
      %p63 = por %p61, %p62
      %p64 = scmp.ne.s32.totalorder %s50, %s51
      %p65 = scmp.eq.s32.totalorder %s31, 1
      %p66 = por %p64, %p65
      %p68 = scmp.ne.s32.totalorder %s51, %s67
      %p69 = scmp.eq.s32.totalorder %s31, 0
      %p70 = por %p68, %p69
      %s71 = ssub.s32 %s33, %s40
      %p72 = scmp.eq.s32.totalorder %s71, 0
      %s74 = sadd.s32 %s73, 1
      %s75 = scalar_select %p72, %s73, %s74
      %p78 = pneg %p72
      %p79 = scmp.eq.s32.totalorder %s25, 1
      %p80 = por %p78, %p79
      %p81 = scmp.ne.s32.totalorder %s73, %s76
      %p82 = scmp.eq.s32.totalorder %s25, 0
      %p83 = por %p81, %p82
      %p84 = scmp.ne.s32.totalorder %s73, %s76
      %p85 = scmp.eq.s32.totalorder %s30, 1
      %p86 = por %p84, %p85
      %p87 = scmp.ne.s32.totalorder %s76, %s77
      %p88 = scmp.eq.s32.totalorder %s30, 0
      %p89 = por %p87, %p88
      %p90 = scmp.ne.s32.totalorder %s76, %s77
      %p91 = scmp.eq.s32.totalorder %s31, 1
      %p92 = por %p90, %p91
      %p94 = scmp.ne.s32.totalorder %s77, %s93
      %p95 = scmp.eq.s32.totalorder %s31, 0
      %p96 = por %p94, %p95
      %s97 = ssub.s32 %s33, %s40
      %p98 = scmp.eq.s32.totalorder %s97, 0
      %s100 = sadd.s32 %s99, 1
      %s101 = scalar_select %p98, %s99, %s100
      %p104 = pneg %p98
      %p105 = scmp.eq.s32.totalorder %s25, 1
      %p106 = por %p104, %p105
      %p107 = scmp.ne.s32.totalorder %s99, %s102
      %p108 = scmp.eq.s32.totalorder %s25, 0
      %p109 = por %p107, %p108
      %p110 = scmp.ne.s32.totalorder %s99, %s102
      %p111 = scmp.eq.s32.totalorder %s30, 1
      %p112 = por %p110, %p111
      %p113 = scmp.ne.s32.totalorder %s102, %s103
      %p114 = scmp.eq.s32.totalorder %s30, 0
      %p115 = por %p113, %p114
      %p116 = scmp.ne.s32.totalorder %s102, %s103
      %p117 = scmp.eq.s32.totalorder %s31, 1
      %p118 = por %p116, %p117
      %p120 = scmp.ne.s32.totalorder %s103, %s119
      %p121 = scmp.eq.s32.totalorder %s31, 0
      %p122 = por %p120, %p121
      %s123 = ssub.s32 %s33, %s40
      %p124 = scmp.eq.s32.totalorder %s123, 0
      %s126 = sadd.s32 %s125, 1
      %s127 = scalar_select %p124, %s125, %s126
      %p130 = pneg %p124
      %p131 = scmp.eq.s32.totalorder %s25, 1
      %p132 = por %p130, %p131
      %p133 = scmp.ne.s32.totalorder %s125, %s128
      %p134 = scmp.eq.s32.totalorder %s25, 0
      %p135 = por %p133, %p134
      %p136 = scmp.ne.s32.totalorder %s125, %s128
      %p137 = scmp.eq.s32.totalorder %s30, 1
      %p138 = por %p136, %p137
      %p139 = scmp.ne.s32.totalorder %s128, %s129
      %p140 = scmp.eq.s32.totalorder %s30, 0
      %p141 = por %p139, %p140
      %p142 = scmp.ne.s32.totalorder %s128, %s129
      %p143 = scmp.eq.s32.totalorder %s31, 1
      %p144 = por %p142, %p143
      %p146 = scmp.ne.s32.totalorder %s129, %s145
      %p147 = scmp.eq.s32.totalorder %s31, 0
      %p148 = por %p146, %p147
      %s149 = ssub.s32 %s33, %s40
      %p150 = scmp.eq.s32.totalorder %s149, 0
      %s152 = sadd.s32 %s151, 1
      %s153 = scalar_select %p150, %s151, %s152
      %p156 = pneg %p150
      %p157 = scmp.eq.s32.totalorder %s25, 1
      %p158 = por %p156, %p157
      %p159 = scmp.ne.s32.totalorder %s151, %s154
      %p160 = scmp.eq.s32.totalorder %s25, 0
      %p161 = por %p159, %p160
      %p162 = scmp.ne.s32.totalorder %s151, %s154
      %p163 = scmp.eq.s32.totalorder %s30, 1
      %p164 = por %p162, %p163
      %p165 = scmp.ne.s32.totalorder %s154, %s155
      %p166 = scmp.eq.s32.totalorder %s30, 0
      %p167 = por %p165, %p166
      %p168 = scmp.ne.s32.totalorder %s154, %s155
      %p169 = scmp.eq.s32.totalorder %s31, 1
      %p170 = por %p168, %p169
      %p172 = scmp.ne.s32.totalorder %s155, %s171
      %p173 = scmp.eq.s32.totalorder %s31, 0
      %p174 = por %p172, %p173
      %s175 = ssub.s32 %s33, %s40
      %p176 = scmp.eq.s32.totalorder %s175, 0
      %s178 = sadd.s32 %s177, 1
      %s179 = scalar_select %p176, %s177, %s178
      %p182 = pneg %p176
      %p183 = scmp.eq.s32.totalorder %s25, 1
      %p184 = por %p182, %p183
      %p185 = scmp.ne.s32.totalorder %s177, %s180
      %p186 = scmp.eq.s32.totalorder %s25, 0
      %p187 = por %p185, %p186
      %p188 = scmp.ne.s32.totalorder %s177, %s180
      %p189 = scmp.eq.s32.totalorder %s30, 1
      %p190 = por %p188, %p189
      %p191 = scmp.ne.s32.totalorder %s180, %s181
      %p192 = scmp.eq.s32.totalorder %s30, 0
      %p193 = por %p191, %p192
      %p194 = scmp.ne.s32.totalorder %s180, %s181
      %p195 = scmp.eq.s32.totalorder %s31, 1
      %p196 = por %p194, %p195
      %p198 = scmp.ne.s32.totalorder %s181, %s197
      %p199 = scmp.eq.s32.totalorder %s31, 0
      %p200 = por %p198, %p199
      %s201 = ssub.s32 %s33, %s40
      %p202 = scmp.eq.s32.totalorder %s201, 0
      %s204 = sadd.s32 %s203, 1
      %s205 = scalar_select %p202, %s203, %s204
      %p208 = pneg %p202
      %p209 = scmp.eq.s32.totalorder %s25, 1
      %p210 = por %p208, %p209
      %p211 = scmp.ne.s32.totalorder %s203, %s206
      %p212 = scmp.eq.s32.totalorder %s25, 0
      %p213 = por %p211, %p212
      %p214 = scmp.ne.s32.totalorder %s203, %s206
      %p215 = scmp.eq.s32.totalorder %s30, 1
      %p216 = por %p214, %p215
      %p217 = scmp.ne.s32.totalorder %s206, %s207
      %p218 = scmp.eq.s32.totalorder %s30, 0
      %p219 = por %p217, %p218
      %p220 = scmp.ne.s32.totalorder %s206, %s207
      %p221 = scmp.eq.s32.totalorder %s31, 1
      %p222 = por %p220, %p221
      %p224 = scmp.ne.s32.totalorder %s207, %s223
      %p225 = scmp.eq.s32.totalorder %s31, 0
      %p226 = por %p224, %p225
      %s227 = ssub.s32 %s33, %s40
      %p228 = scmp.eq.s32.totalorder %s227, 0
      %s230 = sadd.s32 %s229, 1
      %s231 = scalar_select %p228, %s229, %s230
      %p234 = pneg %p228
      %p235 = scmp.eq.s32.totalorder %s25, 1
      %p236 = por %p234, %p235
      %p237 = scmp.ne.s32.totalorder %s229, %s232
      %p238 = scmp.eq.s32.totalorder %s25, 0
      %p239 = por %p237, %p238
      %p240 = scmp.ne.s32.totalorder %s229, %s232
      %p241 = scmp.eq.s32.totalorder %s30, 1
      %p242 = por %p240, %p241
      %p243 = scmp.ne.s32.totalorder %s232, %s233
      %p244 = scmp.eq.s32.totalorder %s30, 0
      %p245 = por %p243, %p244
      %p246 = scmp.ne.s32.totalorder %s232, %s233
      %p247 = scmp.eq.s32.totalorder %s31, 1
      %p248 = por %p246, %p247
      %p250 = scmp.ne.s32.totalorder %s233, %s249
      %p251 = scmp.eq.s32.totalorder %s31, 0
      %p252 = por %p250, %p251
      %s253 = ssub.s32 %s32, %s44
      %p254 = scmp.eq.s32.totalorder %s253, 0
      %s256 = sadd.s32 %s255, 1
      %s257 = scalar_select %p254, %s255, %s256
      %p260 = pneg %p254
      %p261 = scmp.eq.s32.totalorder %s25, 1
      %p262 = por %p260, %p261
      %p263 = scmp.ne.s32.totalorder %s255, %s258
      %p264 = scmp.eq.s32.totalorder %s25, 0
      %p265 = por %p263, %p264
      %p266 = scmp.ne.s32.totalorder %s255, %s258
      %p267 = scmp.eq.s32.totalorder %s30, 1
      %p268 = por %p266, %p267
      %p269 = scmp.ne.s32.totalorder %s258, %s259
      %p270 = scmp.eq.s32.totalorder %s30, 0
      %p271 = por %p269, %p270
      %p272 = scmp.ne.s32.totalorder %s258, %s259
      %p273 = scmp.eq.s32.totalorder %s31, 1
      %p274 = por %p272, %p273
      %p276 = scmp.ne.s32.totalorder %s259, %s275
      %p277 = scmp.eq.s32.totalorder %s31, 0
      %p278 = por %p276, %p277
      %p279 = scmp.le.s32.totalorder 1, %s25
      %p280 = scmp.lt.s32.totalorder %s25, 3
      %p281 = pnand %p279, %p280
      %p282 = pneg %p281
      // Predicated region
      $region9: #{tpu_custom_call.1} parent=5 // pred_check
        _
      $region10: #{tpu_custom_call.1} parent=5 // pred_check_branch
        %284 = sbr.rel (%p281) target = $region12
      $region11: #{tpu_custom_call.1} parent=5 // pred_region
        %s285 = ssub.s32 %s25, 1
        // Predicated region
        $region13: #{tpu_custom_call.1} parent=11 // pred_check
          %p286 = pneg %p63
        $region14: #{tpu_custom_call.1} parent=11 // pred_check_branch
          %288 = sbr.rel (%p286) target = $region16
        $region15: #{tpu_custom_call.1} parent=11 // pred_region
          %s289 = smul.u32 2, %s34
          %s291 = ssub.s32 256, 256
          %292 = vsyncadd [#allocation5], %s291
          %s293 = smul.addr %s289, 128
          %s294 = scalar_lea.hbm %s0, %s293
          %s295 = sshll.u32 [#allocation4], 4
          %s296 = int_to_ptr.vmem [resolvable:$true] %s295
          %301 = dma.hbm_to_vmem [thread:$0]  %s294, 256, %s296, [#allocation5], 128, 128, 8
        $region16: #{tpu_custom_call.1} parent=11 // pred_fallthru
          _
      $region12: #{tpu_custom_call.1} parent=5 // pred_fallthru
        _
      %p302 = scmp.lt.s32.totalorder %s25, 2
      // Predicated region
      $region17: #{tpu_custom_call.1} parent=5 // pred_check
        %p303 = pneg %p302
      $region18: #{tpu_custom_call.1} parent=5 // pred_check_branch
        %305 = sbr.rel (%p303) target = $region20
      $region19: #{tpu_custom_call.1} parent=5 // pred_region
        // Predicated region
        $region21: #{tpu_custom_call.1} parent=19 // pred_check
          %p306 = pneg %p83
        $region22: #{tpu_custom_call.1} parent=19 // pred_check_branch
          %308 = sbr.rel (%p306) target = $region24
        $region23: #{tpu_custom_call.1} parent=19 // pred_region
          %s309 = sand.u32 %s25, 1
          %s310 = scalar_lea.sflag [#allocation8], %s309
          %s311 = sand.u32 %s73, 1
          %s312 = smul.addr %s311, 16
          %s313 = scalar_lea.vmem [#allocation7], %s312
          %s315 = ssub.s32 256, 256
          %316 = vsyncadd %s310, %s315
          %s317 = smul.addr %s33, 4
          %s318 = smul.addr %s317, 64
          %s319 = scalar_lea.hbm %s1, %s318
          %s320 = sshll.u32 %s313, 4
          %s321 = int_to_ptr.vmem [resolvable:$true] %s320
          %326 = dma.hbm_to_vmem [thread:$0]  %s319, 256, %s321, %s310, 64, 64, 4
        $region24: #{tpu_custom_call.1} parent=19 // pred_fallthru
          _
        // Predicated region
        $region25: #{tpu_custom_call.1} parent=19 // pred_check
          %p327 = pneg %p109
        $region26: #{tpu_custom_call.1} parent=19 // pred_check_branch
          %329 = sbr.rel (%p327) target = $region28
        $region27: #{tpu_custom_call.1} parent=19 // pred_region
          %p330 = scmp.lt.s32.totalorder %s33, 1
          %s331 = scalar_select %p330, %s33, 1
          %s332 = scalar_lea.vmem %s2, %s331
        $region28: #{tpu_custom_call.1} parent=19 // pred_fallthru
          _
        // Predicated region
        $region29: #{tpu_custom_call.1} parent=19 // pred_check
          %p333 = pneg %p135
        $region30: #{tpu_custom_call.1} parent=19 // pred_check_branch
          %335 = sbr.rel (%p333) target = $region32
        $region31: #{tpu_custom_call.1} parent=19 // pred_region
          %s336 = sand.u32 %s25, 1
          %s337 = scalar_lea.sflag [#allocation8], %s336
          %s338 = sand.u32 %s125, 1
          %s339 = smul.addr %s338, 16
          %s340 = scalar_lea.vmem [#allocation9], %s339
          %s342 = ssub.s32 256, 256
          %343 = vsyncadd %s337, %s342
          %s344 = smul.addr %s33, 4
          %s345 = smul.addr %s344, 64
          %s346 = scalar_lea.hbm %s3, %s345
          %s347 = sshll.u32 %s340, 4
          %s348 = int_to_ptr.vmem [resolvable:$true] %s347
          %353 = dma.hbm_to_vmem [thread:$0]  %s346, 256, %s348, %s337, 64, 64, 4
        $region32: #{tpu_custom_call.1} parent=19 // pred_fallthru
          _
        // Predicated region
        $region33: #{tpu_custom_call.1} parent=19 // pred_check
          %p354 = pneg %p161
        $region34: #{tpu_custom_call.1} parent=19 // pred_check_branch
          %356 = sbr.rel (%p354) target = $region36
        $region35: #{tpu_custom_call.1} parent=19 // pred_region
          %s357 = sand.u32 %s25, 1
          %s358 = scalar_lea.sflag [#allocation11], %s357
          %s359 = sand.u32 %s151, 1
          %s360 = smul.addr %s359, 16
          %s361 = scalar_lea.vmem [#allocation10], %s360
          %s363 = ssub.s32 256, 256
          %364 = vsyncadd %s358, %s363
          %s365 = smul.addr %s33, 4
          %s366 = smul.addr %s365, 64
          %s367 = scalar_lea.hbm %s4, %s366
          %s368 = sshll.u32 %s361, 4
          %s369 = int_to_ptr.vmem [resolvable:$true] %s368
          %374 = dma.hbm_to_vmem [thread:$0]  %s367, 256, %s369, %s358, 64, 64, 4
        $region36: #{tpu_custom_call.1} parent=19 // pred_fallthru
          _
        // Predicated region
        $region37: #{tpu_custom_call.1} parent=19 // pred_check
          %p375 = pneg %p187
        $region38: #{tpu_custom_call.1} parent=19 // pred_check_branch
          %377 = sbr.rel (%p375) target = $region40
        $region39: #{tpu_custom_call.1} parent=19 // pred_region
          %s378 = sand.u32 %s25, 1
          %s379 = scalar_lea.sflag [#allocation11], %s378
          %s380 = sand.u32 %s177, 1
          %s381 = smul.addr %s380, 16
          %s382 = scalar_lea.vmem [#allocation12], %s381
          %s384 = ssub.s32 256, 256
          %385 = vsyncadd %s379, %s384
          %s386 = smul.addr %s33, 4
          %s387 = smul.addr %s386, 64
          %s388 = scalar_lea.hbm %s5, %s387
          %s389 = sshll.u32 %s382, 4
          %s390 = int_to_ptr.vmem [resolvable:$true] %s389
          %395 = dma.hbm_to_vmem [thread:$0]  %s388, 256, %s390, %s379, 64, 64, 4
        $region40: #{tpu_custom_call.1} parent=19 // pred_fallthru
          _
        // Predicated region
        $region41: #{tpu_custom_call.1} parent=19 // pred_check
          %p396 = pneg %p213
        $region42: #{tpu_custom_call.1} parent=19 // pred_check_branch
          %398 = sbr.rel (%p396) target = $region44
        $region43: #{tpu_custom_call.1} parent=19 // pred_region
          %s399 = sand.u32 %s203, 1
          %s400 = scalar_lea.sflag [#allocation14], %s399
          %s401 = sand.u32 %s203, 1
          %s402 = smul.addr %s401, 16
          %s403 = scalar_lea.vmem [#allocation13], %s402
          %s405 = ssub.s32 256, 256
          %406 = vsyncadd %s400, %s405
          %s407 = smul.addr %s33, 4
          %s408 = smul.addr %s407, 64
          %s409 = scalar_lea.hbm %s6, %s408
          %s410 = sshll.u32 %s403, 4
          %s411 = int_to_ptr.vmem [resolvable:$true] %s410
          %416 = dma.hbm_to_vmem [thread:$0]  %s409, 256, %s411, %s400, 64, 64, 4
        $region44: #{tpu_custom_call.1} parent=19 // pred_fallthru
          _
        // Predicated region
        $region45: #{tpu_custom_call.1} parent=19 // pred_check
          %p417 = pneg %p239
        $region46: #{tpu_custom_call.1} parent=19 // pred_check_branch
          %419 = sbr.rel (%p417) target = $region48
        $region47: #{tpu_custom_call.1} parent=19 // pred_region
          %p420 = scmp.lt.s32.totalorder %s33, 1
          %s421 = scalar_select %p420, %s33, 1
          %s422 = smul.addr %s421, 8
          %s423 = scalar_lea.vmem %s7, %s422
        $region48: #{tpu_custom_call.1} parent=19 // pred_fallthru
          _
      $region20: #{tpu_custom_call.1} parent=5 // pred_fallthru
        _
      %p424 = scmp.le.s32.totalorder 1, %s25
      %p425 = scmp.lt.s32.totalorder %s25, 3
      %p426 = pnand %p424, %p425
      %p427 = pneg %p426
      // Predicated region
      $region49: #{tpu_custom_call.1} parent=5 // pred_check
        _
      $region50: #{tpu_custom_call.1} parent=5 // pred_check_branch
        %429 = sbr.rel (%p426) target = $region52
      $region51: #{tpu_custom_call.1} parent=5 // pred_region
        %s430 = ssub.s32 %s25, 1
        // Predicated region
        $region53: #{tpu_custom_call.1} parent=51 // pred_check
          %p431 = pneg %p63
        $region54: #{tpu_custom_call.1} parent=51 // pred_check_branch
          %433 = sbr.rel (%p431) target = $region56
        $region55: #{tpu_custom_call.1} parent=51 // pred_region
          %434 = dma.done [#allocation5], 256
        $region56: #{tpu_custom_call.1} parent=51 // pred_fallthru
          _
        %s435 = sand.u32 %s30, 1
        %s436 = scalar_lea.sflag [#allocation8], %s435
        %s437 = sand.u32 %s76, 1
        %s438 = smul.addr %s437, 16
        %s439 = scalar_lea.vmem [#allocation7], %s438
        // Predicated region
        $region57: #{tpu_custom_call.1} parent=51 // pred_check
          %p440 = pneg %p89
        $region58: #{tpu_custom_call.1} parent=51 // pred_check_branch
          %442 = sbr.rel (%p440) target = $region60
        $region59: #{tpu_custom_call.1} parent=51 // pred_region
          %443 = dma.done %s436, 256
        $region60: #{tpu_custom_call.1} parent=51 // pred_fallthru
          _
        %s444 = sand.u32 %s30, 1
        %s445 = scalar_lea.sflag [#allocation8], %s444
        %s446 = sand.u32 %s128, 1
        %s447 = smul.addr %s446, 16
        %s448 = scalar_lea.vmem [#allocation9], %s447
        // Predicated region
        $region61: #{tpu_custom_call.1} parent=51 // pred_check
          %p449 = pneg %p141
        $region62: #{tpu_custom_call.1} parent=51 // pred_check_branch
          %451 = sbr.rel (%p449) target = $region64
        $region63: #{tpu_custom_call.1} parent=51 // pred_region
          %452 = dma.done %s445, 256
        $region64: #{tpu_custom_call.1} parent=51 // pred_fallthru
          _
        %s453 = sand.u32 %s30, 1
        %s454 = scalar_lea.sflag [#allocation11], %s453
        %s455 = sand.u32 %s154, 1
        %s456 = smul.addr %s455, 16
        %s457 = scalar_lea.vmem [#allocation10], %s456
        // Predicated region
        $region65: #{tpu_custom_call.1} parent=51 // pred_check
          %p458 = pneg %p167
        $region66: #{tpu_custom_call.1} parent=51 // pred_check_branch
          %460 = sbr.rel (%p458) target = $region68
        $region67: #{tpu_custom_call.1} parent=51 // pred_region
          %461 = dma.done %s454, 256
        $region68: #{tpu_custom_call.1} parent=51 // pred_fallthru
          _
        %s462 = sand.u32 %s30, 1
        %s463 = scalar_lea.sflag [#allocation11], %s462
        %s464 = sand.u32 %s180, 1
        %s465 = smul.addr %s464, 16
        %s466 = scalar_lea.vmem [#allocation12], %s465
        // Predicated region
        $region69: #{tpu_custom_call.1} parent=51 // pred_check
          %p467 = pneg %p193
        $region70: #{tpu_custom_call.1} parent=51 // pred_check_branch
          %469 = sbr.rel (%p467) target = $region72
        $region71: #{tpu_custom_call.1} parent=51 // pred_region
          %470 = dma.done %s463, 256
        $region72: #{tpu_custom_call.1} parent=51 // pred_fallthru
          _
        %s471 = sand.u32 %s206, 1
        %s472 = scalar_lea.sflag [#allocation14], %s471
        %s473 = sand.u32 %s206, 1
        %s474 = smul.addr %s473, 16
        %s475 = scalar_lea.vmem [#allocation13], %s474
        // Predicated region
        $region73: #{tpu_custom_call.1} parent=51 // pred_check
          %p476 = pneg %p219
        $region74: #{tpu_custom_call.1} parent=51 // pred_check_branch
          %478 = sbr.rel (%p476) target = $region76
        $region75: #{tpu_custom_call.1} parent=51 // pred_region
          %479 = dma.done %s472, 256
        $region76: #{tpu_custom_call.1} parent=51 // pred_fallthru
          _
        %p480 = pneg %p63
        %p481 = pneg %p60
        %s482 = sand.u32 %s30, 1
        %s483 = scalar_lea.sflag [#allocation8], %s482
        %s484 = sand.u32 %s76, 1
        %s485 = smul.addr %s484, 16
        %s486 = scalar_lea.vmem [#allocation7], %s485
        %p487 = pneg %p89
        %p488 = pneg %p86
        %p489 = scmp.lt.s32.totalorder %s35, 1
        %s490 = scalar_select %p489, %s35, 1
        %s491 = scalar_lea.vmem %s2, %s490
        %p492 = pneg %p115
        %p493 = pneg %p112
        %s494 = sand.u32 %s30, 1
        %s495 = scalar_lea.sflag [#allocation8], %s494
        %s496 = sand.u32 %s128, 1
        %s497 = smul.addr %s496, 16
        %s498 = scalar_lea.vmem [#allocation9], %s497
        %p499 = pneg %p141
        %p500 = pneg %p138
        %s501 = sand.u32 %s30, 1
        %s502 = scalar_lea.sflag [#allocation11], %s501
        %s503 = sand.u32 %s154, 1
        %s504 = smul.addr %s503, 16
        %s505 = scalar_lea.vmem [#allocation10], %s504
        %p506 = pneg %p167
        %p507 = pneg %p164
        %s508 = sand.u32 %s30, 1
        %s509 = scalar_lea.sflag [#allocation11], %s508
        %s510 = sand.u32 %s180, 1
        %s511 = smul.addr %s510, 16
        %s512 = scalar_lea.vmem [#allocation12], %s511
        %p513 = pneg %p193
        %p514 = pneg %p190
        %s515 = sand.u32 %s206, 1
        %s516 = scalar_lea.sflag [#allocation14], %s515
        %s517 = sand.u32 %s206, 1
        %s518 = smul.addr %s517, 16
        %s519 = scalar_lea.vmem [#allocation13], %s518
        %p520 = pneg %p219
        %p521 = pneg %p216
        %p522 = scmp.lt.s32.totalorder %s35, 1
        %s523 = scalar_select %p522, %s35, 1
        %s524 = smul.addr %s523, 8
        %s525 = scalar_lea.vmem %s7, %s524
        %p526 = pneg %p245
        %p527 = pneg %p242
        %p528 = pneg %p271
        %p529 = pneg %p268
        %s530 = smul.u32 2, %s34
        %p531 = scmp.lt.s32.totalorder %s35, 1
        %s532 = scalar_select %p531, %s35, 1
        %s533 = scalar_lea.vmem %s2, %s532
        %p534 = scmp.lt.s32.totalorder %s35, 1
        %s535 = scalar_select %p534, %s35, 1
        %s536 = smul.addr %s535, 8
        %s537 = scalar_lea.vmem %s7, %s536
        %s538 = smul.u32 2, %s34
        %p540 = scmp.eq.s32.totalorder %s35, 0
        // Predicated region
        $region77: #{tpu_custom_call.1} parent=51 // pred_check
          %p541 = pneg %p540
        $region78: #{tpu_custom_call.1} parent=51 // pred_check_branch
          %543 = sbr.rel (%p541) target = $region80
        $region79: #{tpu_custom_call.1} parent=51 // pred_region
          %v544 = vld [vmem:[#allocation4] sm:$0xff]
          %v545 = vld [vmem:[#allocation4 + $0x8] sm:$0xff]
          %vm546 = vcmask 261120
          %547 = vst.msk [vmem:[#allocation2] sm:$0xff] %vm546, %v544
          %548 = vst.msk [vmem:[#allocation2 + $0x8] sm:$0xff] %vm546, %v545
        $region80: #{tpu_custom_call.1} parent=51 // pred_fallthru
          _
        %v549 = vld [vmem:[#allocation2] sm:$0xff]
        %v550 = vld [vmem:[#allocation2 + $0x8] sm:$0xff]
        %v551 = vpack.c.bf16 %v550, %v549
        %v552 = vld [vmem:[%s537] sm:$0xff]
        %v553 = vld [vmem:[%s439] sm:$0xf]
        %v554 = vld [vmem:[%s439 + $0x4] sm:$0xf]
        %v555 = vld [vmem:[%s439 + $0x8] sm:$0xf]
        %v556 = vld [vmem:[%s439 + $0xc] sm:$0xf]
        %v557 = vld [vmem:[%s533] sm:$0x1]
        %v559 = vlaneseq
        %v560 = vshrl.u32 %v559, 7
        %v561 = vsub.s32 0, %v560
        %v562 = vrot.slane %v557, %v561
        %v568 = vunpack.c.l.b16 %v553
        %v569 = vunpack.c.l.b16 %v554
        %v570 = vunpack.c.l.b16 %v555
        %v571 = vunpack.c.l.b16 %v556
        %v572 = vpack.c.b16 %v569, %v568
        %v573 = vpack.c.b16 %v571, %v570
        %vm576 = vcmask 261120
        %v578 = vsel %vm576, %v551, 0
        %580 = vmatprep.subr.bf16.mxu0 0
        %581 = vmatpush1.bf16.msra.mxu0 %v572
        %582 = vmatprep.subr.bf16.mxu0 0
        %583 = vmatpush1.bf16.msra.mxu0 %v573
        %584 = vmatprep.subr.bf16.mxu0 0
        %585 = vmatpush1.bf16.msra.mxu0 0
        %586 = vmatprep.subr.bf16.mxu0 0
        %587 = vmatpush1.bf16.msra.mxu0 0
        %588 = vmatprep.subr.bf16.mxu0 0
        %589 = vmatpush1.bf16.msra.mxu0 0
        %590 = vmatprep.subr.bf16.mxu0 0
        %591 = vmatpush1.bf16.msra.mxu0 0
        %592 = vmatprep.subr.bf16.mxu0 0
        %593 = vmatpush1.bf16.msra.mxu0 0
        %594 = vmatprep.subr.bf16.mxu0 0
        %595 = vmatpush1.bf16.msra.mxu0 0
        %596 = vmatprep.subr.bf16.mxu0 0
        %597 = vmatpush1.bf16.msra.mxu0 0
        %598 = vmatprep.subr.bf16.mxu0 0
        %599 = vmatpush1.bf16.msra.mxu0 0
        %600 = vmatprep.subr.bf16.mxu0 0
        %601 = vmatpush1.bf16.msra.mxu0 0
        %602 = vmatprep.subr.bf16.mxu0 0
        %603 = vmatpush1.bf16.msra.mxu0 0
        %604 = vmatprep.subr.bf16.mxu0 0
        %605 = vmatpush1.bf16.msra.mxu0 0
        %606 = vmatprep.subr.bf16.mxu0 0
        %607 = vmatpush1.bf16.msra.mxu0 0
        %608 = vmatprep.subr.bf16.mxu0 0
        %609 = vmatpush1.bf16.msra.mxu0 0
        %610 = vmatprep.subr.bf16.mxu0 0
        %611 = vmatpush1.bf16.msra.mxu0 0
        %612 = vmatprep.mubr.bf16.mxu0 0
        %613 = vmatmul.mubr.bf16.gmra.mrb[0].mxu0 %v578
        %v614 = vpop.f32.mrb[0].mxu0
        %v615 = vadd.f32 %v562, %v614
        %v616 = vpop.f32.mrb[0].mxu0
        %v617 = vpop.f32.mrb[0].mxu0
        %v618 = vadd.f32 %v562, %v617
        %v619 = vpop.f32.mrb[0].mxu0
        %620 = vdwg.mxu0
        %622 = vrot.lane.b32.xlu0 %v615, 120
        %v623 = vpop.permute.xlu0 %622
        %625 = vrot.lane.b32.xlu0 %v615, 112
        %v626 = vpop.permute.xlu0 %625
        %628 = vrot.lane.b32.xlu0 %v615, 104
        %v629 = vpop.permute.xlu0 %628
        %632 = vrot.lane.b32.xlu0 %v618, 120
        %v633 = vpop.permute.xlu0 %632
        %635 = vrot.lane.b32.xlu0 %v618, 112
        %v636 = vpop.permute.xlu0 %635
        %638 = vrot.lane.b32.xlu0 %v618, 104
        %v639 = vpop.permute.xlu0 %638
        %v641 = vmul.f32 %v615, 0.35355338
        %v642 = vmul.f32 %v623, 0.35355338
        %v643 = vmul.f32 %v626, 0.35355338
        %v644 = vmul.f32 %v629, 0.35355338
        %v645 = vmul.f32 %v618, 0.35355338
        %v646 = vmul.f32 %v633, 0.35355338
        %v647 = vmul.f32 %v636, 0.35355338
        %v648 = vmul.f32 %v639, 0.35355338
        %v649 = vpack.c.bf16 %v641, %v641
        %v650 = vpack.c.bf16 %v642, %v642
        %v651 = vpack.c.bf16 %v643, %v643
        %v652 = vpack.c.bf16 %v644, %v644
        %v653 = vpack.c.bf16 %v645, %v645
        %v654 = vpack.c.bf16 %v646, %v646
        %v655 = vpack.c.bf16 %v647, %v647
        %v656 = vpack.c.bf16 %v648, %v648
        %v657 = vpack.c.bf16 %v615, %v615
        %v658 = vpack.c.bf16 %v623, %v623
        %v659 = vpack.c.bf16 %v626, %v626
        %v660 = vpack.c.bf16 %v629, %v629
        %v661 = vpack.c.bf16 %v618, %v618
        %v662 = vpack.c.bf16 %v633, %v633
        %v663 = vpack.c.bf16 %v636, %v636
        %v664 = vpack.c.bf16 %v639, %v639
        %666 = vrot.lane.b32.xlu0 %v657, 96
        %v667 = vpop.permute.xlu0 %666
        %vm668 = vcmask 64512
        %v670 = vsel %vm668, %v649, 0
        %v673 = vsel %vm668, %v667, 0
        %675 = vmatprep.subr.bf16.mxu0 0
        %676 = vmatpush1.bf16.xpose.msra.mxu0 %v673
        %677 = vmatprep.subr.bf16.mxu0 0
        %678 = vmatpush1.bf16.xpose.msra.mxu0 0
        %679 = vmatprep.subr.bf16.mxu0 0
        %680 = vmatpush1.bf16.xpose.msra.mxu0 0
        %681 = vmatprep.subr.bf16.mxu0 0
        %682 = vmatpush1.bf16.xpose.msra.mxu0 0
        %683 = vmatprep.subr.bf16.mxu0 0
        %684 = vmatpush1.bf16.xpose.msra.mxu0 0
        %685 = vmatprep.subr.bf16.mxu0 0
        %686 = vmatpush1.bf16.xpose.msra.mxu0 0
        %687 = vmatprep.subr.bf16.mxu0 0
        %688 = vmatpush1.bf16.xpose.msra.mxu0 0
        %689 = vmatprep.subr.bf16.mxu0 0
        %690 = vmatpush1.bf16.xpose.msra.mxu0 0
        %691 = vmatprep.subr.bf16.mxu0 0
        %692 = vmatpush1.bf16.xpose.msra.mxu0 0
        %693 = vmatprep.subr.bf16.mxu0 0
        %694 = vmatpush1.bf16.xpose.msra.mxu0 0
        %695 = vmatprep.subr.bf16.mxu0 0
        %696 = vmatpush1.bf16.xpose.msra.mxu0 0
        %697 = vmatprep.subr.bf16.mxu0 0
        %698 = vmatpush1.bf16.xpose.msra.mxu0 0
        %699 = vmatprep.subr.bf16.mxu0 0
        %700 = vmatpush1.bf16.xpose.msra.mxu0 0
        %701 = vmatprep.subr.bf16.mxu0 0
        %702 = vmatpush1.bf16.xpose.msra.mxu0 0
        %703 = vmatprep.subr.bf16.mxu0 0
        %704 = vmatpush1.bf16.xpose.msra.mxu0 0
        %705 = vmatprep.subr.bf16.mxu0 0
        %706 = vmatpush1.bf16.xpose.msra.mxu0 0
        %707 = vmatprep.mubr.bf16.mxu0 0
        %708 = vmatmul.mubr.bf16.gmra.mrb[0].mxu0 %v670
        %v709 = vpop.f32.mrb[0].mxu0
        %v710 = vadd.f32 0.0, %v709
        %v711 = vpop.f32.mrb[0].mxu0
        %v712 = vpop.f32.mrb[0].mxu0
        %v713 = vpop.f32.mrb[0].mxu0
        %714 = vdwg.mxu0
        %716 = vrot.lane.b32.xlu0 %v658, 96
        %v717 = vpop.permute.xlu0 %716
        %v719 = vsel %vm668, %v650, 0
        %v722 = vsel %vm668, %v717, 0
        %724 = vmatprep.subr.bf16.mxu0 0
        %725 = vmatpush1.bf16.xpose.msra.mxu0 %v722
        %726 = vmatprep.subr.bf16.mxu0 0
        %727 = vmatpush1.bf16.xpose.msra.mxu0 0
        %728 = vmatprep.subr.bf16.mxu0 0
        %729 = vmatpush1.bf16.xpose.msra.mxu0 0
        %730 = vmatprep.subr.bf16.mxu0 0
        %731 = vmatpush1.bf16.xpose.msra.mxu0 0
        %732 = vmatprep.subr.bf16.mxu0 0
        %733 = vmatpush1.bf16.xpose.msra.mxu0 0
        %734 = vmatprep.subr.bf16.mxu0 0
        %735 = vmatpush1.bf16.xpose.msra.mxu0 0
        %736 = vmatprep.subr.bf16.mxu0 0
        %737 = vmatpush1.bf16.xpose.msra.mxu0 0
        %738 = vmatprep.subr.bf16.mxu0 0
        %739 = vmatpush1.bf16.xpose.msra.mxu0 0
        %740 = vmatprep.subr.bf16.mxu0 0
        %741 = vmatpush1.bf16.xpose.msra.mxu0 0
        %742 = vmatprep.subr.bf16.mxu0 0
        %743 = vmatpush1.bf16.xpose.msra.mxu0 0
        %744 = vmatprep.subr.bf16.mxu0 0
        %745 = vmatpush1.bf16.xpose.msra.mxu0 0
        %746 = vmatprep.subr.bf16.mxu0 0
        %747 = vmatpush1.bf16.xpose.msra.mxu0 0
        %748 = vmatprep.subr.bf16.mxu0 0
        %749 = vmatpush1.bf16.xpose.msra.mxu0 0
        %750 = vmatprep.subr.bf16.mxu0 0
        %751 = vmatpush1.bf16.xpose.msra.mxu0 0
        %752 = vmatprep.subr.bf16.mxu0 0
        %753 = vmatpush1.bf16.xpose.msra.mxu0 0
        %754 = vmatprep.subr.bf16.mxu0 0
        %755 = vmatpush1.bf16.xpose.msra.mxu0 0
        %756 = vmatprep.mubr.bf16.mxu0 0
        %757 = vmatmul.mubr.bf16.gmra.mrb[0].mxu0 %v719
        %v758 = vpop.f32.mrb[0].mxu0
        %v759 = vadd.f32 0.0, %v758
        %v760 = vpop.f32.mrb[0].mxu0
        %v761 = vpop.f32.mrb[0].mxu0
        %v762 = vpop.f32.mrb[0].mxu0
        %763 = vdwg.mxu0
        %765 = vrot.lane.b32.xlu0 %v659, 96
        %v766 = vpop.permute.xlu0 %765
        %v768 = vsel %vm668, %v651, 0
        %v771 = vsel %vm668, %v766, 0
        %773 = vmatprep.subr.bf16.mxu0 0
        %774 = vmatpush1.bf16.xpose.msra.mxu0 %v771
        %775 = vmatprep.subr.bf16.mxu0 0
        %776 = vmatpush1.bf16.xpose.msra.mxu0 0
        %777 = vmatprep.subr.bf16.mxu0 0
        %778 = vmatpush1.bf16.xpose.msra.mxu0 0
        %779 = vmatprep.subr.bf16.mxu0 0
        %780 = vmatpush1.bf16.xpose.msra.mxu0 0
        %781 = vmatprep.subr.bf16.mxu0 0
        %782 = vmatpush1.bf16.xpose.msra.mxu0 0
        %783 = vmatprep.subr.bf16.mxu0 0
        %784 = vmatpush1.bf16.xpose.msra.mxu0 0
        %785 = vmatprep.subr.bf16.mxu0 0
        %786 = vmatpush1.bf16.xpose.msra.mxu0 0
        %787 = vmatprep.subr.bf16.mxu0 0
        %788 = vmatpush1.bf16.xpose.msra.mxu0 0
        %789 = vmatprep.subr.bf16.mxu0 0
        %790 = vmatpush1.bf16.xpose.msra.mxu0 0
        %791 = vmatprep.subr.bf16.mxu0 0
        %792 = vmatpush1.bf16.xpose.msra.mxu0 0
        %793 = vmatprep.subr.bf16.mxu0 0
        %794 = vmatpush1.bf16.xpose.msra.mxu0 0
        %795 = vmatprep.subr.bf16.mxu0 0
        %796 = vmatpush1.bf16.xpose.msra.mxu0 0
        %797 = vmatprep.subr.bf16.mxu0 0
        %798 = vmatpush1.bf16.xpose.msra.mxu0 0
        %799 = vmatprep.subr.bf16.mxu0 0
        %800 = vmatpush1.bf16.xpose.msra.mxu0 0
        %801 = vmatprep.subr.bf16.mxu0 0
        %802 = vmatpush1.bf16.xpose.msra.mxu0 0
        %803 = vmatprep.subr.bf16.mxu0 0
        %804 = vmatpush1.bf16.xpose.msra.mxu0 0
        %805 = vmatprep.mubr.bf16.mxu0 0
        %806 = vmatmul.mubr.bf16.gmra.mrb[0].mxu0 %v768
        %v807 = vpop.f32.mrb[0].mxu0
        %v808 = vadd.f32 0.0, %v807
        %v809 = vpop.f32.mrb[0].mxu0
        %v810 = vpop.f32.mrb[0].mxu0
        %v811 = vpop.f32.mrb[0].mxu0
        %812 = vdwg.mxu0
        %814 = vrot.lane.b32.xlu0 %v660, 96
        %v815 = vpop.permute.xlu0 %814
        %v817 = vsel %vm668, %v652, 0
        %v820 = vsel %vm668, %v815, 0
        %822 = vmatprep.subr.bf16.mxu0 0
        %823 = vmatpush1.bf16.xpose.msra.mxu0 %v820
        %824 = vmatprep.subr.bf16.mxu0 0
        %825 = vmatpush1.bf16.xpose.msra.mxu0 0
        %826 = vmatprep.subr.bf16.mxu0 0
        %827 = vmatpush1.bf16.xpose.msra.mxu0 0
        %828 = vmatprep.subr.bf16.mxu0 0
        %829 = vmatpush1.bf16.xpose.msra.mxu0 0
        %830 = vmatprep.subr.bf16.mxu0 0
        %831 = vmatpush1.bf16.xpose.msra.mxu0 0
        %832 = vmatprep.subr.bf16.mxu0 0
        %833 = vmatpush1.bf16.xpose.msra.mxu0 0
        %834 = vmatprep.subr.bf16.mxu0 0
        %835 = vmatpush1.bf16.xpose.msra.mxu0 0
        %836 = vmatprep.subr.bf16.mxu0 0
        %837 = vmatpush1.bf16.xpose.msra.mxu0 0
        %838 = vmatprep.subr.bf16.mxu0 0
        %839 = vmatpush1.bf16.xpose.msra.mxu0 0
        %840 = vmatprep.subr.bf16.mxu0 0
        %841 = vmatpush1.bf16.xpose.msra.mxu0 0
        %842 = vmatprep.subr.bf16.mxu0 0
        %843 = vmatpush1.bf16.xpose.msra.mxu0 0
        %844 = vmatprep.subr.bf16.mxu0 0
        %845 = vmatpush1.bf16.xpose.msra.mxu0 0
        %846 = vmatprep.subr.bf16.mxu0 0
        %847 = vmatpush1.bf16.xpose.msra.mxu0 0
        %848 = vmatprep.subr.bf16.mxu0 0
        %849 = vmatpush1.bf16.xpose.msra.mxu0 0
        %850 = vmatprep.subr.bf16.mxu0 0
        %851 = vmatpush1.bf16.xpose.msra.mxu0 0
        %852 = vmatprep.subr.bf16.mxu0 0
        %853 = vmatpush1.bf16.xpose.msra.mxu0 0
        %854 = vmatprep.mubr.bf16.mxu0 0
        %855 = vmatmul.mubr.bf16.gmra.mrb[0].mxu0 %v817
        %v856 = vpop.f32.mrb[0].mxu0
        %v857 = vadd.f32 0.0, %v856
        %v858 = vpop.f32.mrb[0].mxu0
        %v859 = vpop.f32.mrb[0].mxu0
        %v860 = vpop.f32.mrb[0].mxu0
        %861 = vdwg.mxu0
        %863 = vrot.lane.b32.xlu0 %v661, 96
        %v864 = vpop.permute.xlu0 %863
        %v866 = vsel %vm668, %v653, 0
        %v869 = vsel %vm668, %v864, 0
        %871 = vmatprep.subr.bf16.mxu0 0
        %872 = vmatpush1.bf16.xpose.msra.mxu0 %v869
        %873 = vmatprep.subr.bf16.mxu0 0
        %874 = vmatpush1.bf16.xpose.msra.mxu0 0
        %875 = vmatprep.subr.bf16.mxu0 0
        %876 = vmatpush1.bf16.xpose.msra.mxu0 0
        %877 = vmatprep.subr.bf16.mxu0 0
        %878 = vmatpush1.bf16.xpose.msra.mxu0 0
        %879 = vmatprep.subr.bf16.mxu0 0
        %880 = vmatpush1.bf16.xpose.msra.mxu0 0
        %881 = vmatprep.subr.bf16.mxu0 0
        %882 = vmatpush1.bf16.xpose.msra.mxu0 0
        %883 = vmatprep.subr.bf16.mxu0 0
        %884 = vmatpush1.bf16.xpose.msra.mxu0 0
        %885 = vmatprep.subr.bf16.mxu0 0
        %886 = vmatpush1.bf16.xpose.msra.mxu0 0
        %887 = vmatprep.subr.bf16.mxu0 0
        %888 = vmatpush1.bf16.xpose.msra.mxu0 0
        %889 = vmatprep.subr.bf16.mxu0 0
        %890 = vmatpush1.bf16.xpose.msra.mxu0 0
        %891 = vmatprep.subr.bf16.mxu0 0
        %892 = vmatpush1.bf16.xpose.msra.mxu0 0
        %893 = vmatprep.subr.bf16.mxu0 0
        %894 = vmatpush1.bf16.xpose.msra.mxu0 0
        %895 = vmatprep.subr.bf16.mxu0 0
        %896 = vmatpush1.bf16.xpose.msra.mxu0 0
        %897 = vmatprep.subr.bf16.mxu0 0
        %898 = vmatpush1.bf16.xpose.msra.mxu0 0
        %899 = vmatprep.subr.bf16.mxu0 0
        %900 = vmatpush1.bf16.xpose.msra.mxu0 0
        %901 = vmatprep.subr.bf16.mxu0 0
        %902 = vmatpush1.bf16.xpose.msra.mxu0 0
        %903 = vmatprep.mubr.bf16.mxu0 0
        %904 = vmatmul.mubr.bf16.gmra.mrb[0].mxu0 %v866
        %v905 = vpop.f32.mrb[0].mxu0
        %v906 = vadd.f32 0.0, %v905
        %v907 = vpop.f32.mrb[0].mxu0
        %v908 = vpop.f32.mrb[0].mxu0
        %v909 = vpop.f32.mrb[0].mxu0
        %910 = vdwg.mxu0
        %912 = vrot.lane.b32.xlu0 %v662, 96
        %v913 = vpop.permute.xlu0 %912
        %v915 = vsel %vm668, %v654, 0
        %v918 = vsel %vm668, %v913, 0
        %920 = vmatprep.subr.bf16.mxu0 0
        %921 = vmatpush1.bf16.xpose.msra.mxu0 %v918
        %922 = vmatprep.subr.bf16.mxu0 0
        %923 = vmatpush1.bf16.xpose.msra.mxu0 0
        %924 = vmatprep.subr.bf16.mxu0 0
        %925 = vmatpush1.bf16.xpose.msra.mxu0 0
        %926 = vmatprep.subr.bf16.mxu0 0
        %927 = vmatpush1.bf16.xpose.msra.mxu0 0
        %928 = vmatprep.subr.bf16.mxu0 0
        %929 = vmatpush1.bf16.xpose.msra.mxu0 0
        %930 = vmatprep.subr.bf16.mxu0 0
        %931 = vmatpush1.bf16.xpose.msra.mxu0 0
        %932 = vmatprep.subr.bf16.mxu0 0
        %933 = vmatpush1.bf16.xpose.msra.mxu0 0
        %934 = vmatprep.subr.bf16.mxu0 0
        %935 = vmatpush1.bf16.xpose.msra.mxu0 0
        %936 = vmatprep.subr.bf16.mxu0 0
        %937 = vmatpush1.bf16.xpose.msra.mxu0 0
        %938 = vmatprep.subr.bf16.mxu0 0
        %939 = vmatpush1.bf16.xpose.msra.mxu0 0
        %940 = vmatprep.subr.bf16.mxu0 0
        %941 = vmatpush1.bf16.xpose.msra.mxu0 0
        %942 = vmatprep.subr.bf16.mxu0 0
        %943 = vmatpush1.bf16.xpose.msra.mxu0 0
        %944 = vmatprep.subr.bf16.mxu0 0
        %945 = vmatpush1.bf16.xpose.msra.mxu0 0
        %946 = vmatprep.subr.bf16.mxu0 0
        %947 = vmatpush1.bf16.xpose.msra.mxu0 0
        %948 = vmatprep.subr.bf16.mxu0 0
        %949 = vmatpush1.bf16.xpose.msra.mxu0 0
        %950 = vmatprep.subr.bf16.mxu0 0
        %951 = vmatpush1.bf16.xpose.msra.mxu0 0
        %952 = vmatprep.mubr.bf16.mxu0 0
        %953 = vmatmul.mubr.bf16.gmra.mrb[0].mxu0 %v915
        %v954 = vpop.f32.mrb[0].mxu0
        %v955 = vadd.f32 0.0, %v954
        %v956 = vpop.f32.mrb[0].mxu0
        %v957 = vpop.f32.mrb[0].mxu0
        %v958 = vpop.f32.mrb[0].mxu0
        %959 = vdwg.mxu0
        %961 = vrot.lane.b32.xlu0 %v663, 96
        %v962 = vpop.permute.xlu0 %961
        %v964 = vsel %vm668, %v655, 0
        %v967 = vsel %vm668, %v962, 0
        %969 = vmatprep.subr.bf16.mxu0 0
        %970 = vmatpush1.bf16.xpose.msra.mxu0 %v967
        %971 = vmatprep.subr.bf16.mxu0 0
        %972 = vmatpush1.bf16.xpose.msra.mxu0 0
        %973 = vmatprep.subr.bf16.mxu0 0
        %974 = vmatpush1.bf16.xpose.msra.mxu0 0
        %975 = vmatprep.subr.bf16.mxu0 0
        %976 = vmatpush1.bf16.xpose.msra.mxu0 0
        %977 = vmatprep.subr.bf16.mxu0 0
        %978 = vmatpush1.bf16.xpose.msra.mxu0 0
        %979 = vmatprep.subr.bf16.mxu0 0
        %980 = vmatpush1.bf16.xpose.msra.mxu0 0
        %981 = vmatprep.subr.bf16.mxu0 0
        %982 = vmatpush1.bf16.xpose.msra.mxu0 0
        %983 = vmatprep.subr.bf16.mxu0 0
        %984 = vmatpush1.bf16.xpose.msra.mxu0 0
        %985 = vmatprep.subr.bf16.mxu0 0
        %986 = vmatpush1.bf16.xpose.msra.mxu0 0
        %987 = vmatprep.subr.bf16.mxu0 0
        %988 = vmatpush1.bf16.xpose.msra.mxu0 0
        %989 = vmatprep.subr.bf16.mxu0 0
        %990 = vmatpush1.bf16.xpose.msra.mxu0 0
        %991 = vmatprep.subr.bf16.mxu0 0
        %992 = vmatpush1.bf16.xpose.msra.mxu0 0
        %993 = vmatprep.subr.bf16.mxu0 0
        %994 = vmatpush1.bf16.xpose.msra.mxu0 0
        %995 = vmatprep.subr.bf16.mxu0 0
        %996 = vmatpush1.bf16.xpose.msra.mxu0 0
        %997 = vmatprep.subr.bf16.mxu0 0
        %998 = vmatpush1.bf16.xpose.msra.mxu0 0
        %999 = vmatprep.subr.bf16.mxu0 0
        %1000 = vmatpush1.bf16.xpose.msra.mxu0 0
        %1001 = vmatprep.mubr.bf16.mxu0 0
        %1002 = vmatmul.mubr.bf16.gmra.mrb[0].mxu0 %v964
        %v1003 = vpop.f32.mrb[0].mxu0
        %v1004 = vadd.f32 0.0, %v1003
        %v1005 = vpop.f32.mrb[0].mxu0
        %v1006 = vpop.f32.mrb[0].mxu0
        %v1007 = vpop.f32.mrb[0].mxu0
        %1008 = vdwg.mxu0
        %1010 = vrot.lane.b32.xlu0 %v664, 96
        %v1011 = vpop.permute.xlu0 %1010
        %v1013 = vsel %vm668, %v656, 0
        %v1016 = vsel %vm668, %v1011, 0
        %1018 = vmatprep.subr.bf16.mxu0 0
        %1019 = vmatpush1.bf16.xpose.msra.mxu0 %v1016
        %1020 = vmatprep.subr.bf16.mxu0 0
        %1021 = vmatpush1.bf16.xpose.msra.mxu0 0
        %1022 = vmatprep.subr.bf16.mxu0 0
        %1023 = vmatpush1.bf16.xpose.msra.mxu0 0
        %1024 = vmatprep.subr.bf16.mxu0 0
        %1025 = vmatpush1.bf16.xpose.msra.mxu0 0
        %1026 = vmatprep.subr.bf16.mxu0 0
        %1027 = vmatpush1.bf16.xpose.msra.mxu0 0
        %1028 = vmatprep.subr.bf16.mxu0 0
        %1029 = vmatpush1.bf16.xpose.msra.mxu0 0
        %1030 = vmatprep.subr.bf16.mxu0 0
        %1031 = vmatpush1.bf16.xpose.msra.mxu0 0
        %1032 = vmatprep.subr.bf16.mxu0 0
        %1033 = vmatpush1.bf16.xpose.msra.mxu0 0
        %1034 = vmatprep.subr.bf16.mxu0 0
        %1035 = vmatpush1.bf16.xpose.msra.mxu0 0
        %1036 = vmatprep.subr.bf16.mxu0 0
        %1037 = vmatpush1.bf16.xpose.msra.mxu0 0
        %1038 = vmatprep.subr.bf16.mxu0 0
        %1039 = vmatpush1.bf16.xpose.msra.mxu0 0
        %1040 = vmatprep.subr.bf16.mxu0 0
        %1041 = vmatpush1.bf16.xpose.msra.mxu0 0
        %1042 = vmatprep.subr.bf16.mxu0 0
        %1043 = vmatpush1.bf16.xpose.msra.mxu0 0
        %1044 = vmatprep.subr.bf16.mxu0 0
        %1045 = vmatpush1.bf16.xpose.msra.mxu0 0
        %1046 = vmatprep.subr.bf16.mxu0 0
        %1047 = vmatpush1.bf16.xpose.msra.mxu0 0
        %1048 = vmatprep.subr.bf16.mxu0 0
        %1049 = vmatpush1.bf16.xpose.msra.mxu0 0
        %1050 = vmatprep.mubr.bf16.mxu0 0
        %1051 = vmatmul.mubr.bf16.gmra.mrb[0].mxu0 %v1013
        %v1052 = vpop.f32.mrb[0].mxu0
        %v1053 = vadd.f32 0.0, %v1052
        %v1054 = vpop.f32.mrb[0].mxu0
        %v1055 = vpop.f32.mrb[0].mxu0
        %v1056 = vpop.f32.mrb[0].mxu0
        %1057 = vdwg.mxu0
        %v1058 = vlaneseq
        %v1059 = vshrl.u32 %v1058, 7
        %v1060 = vlaneseq
        %v1061 = vand.u32 %v1060, 127
        %vm1062 = vcmp.le.s32.totalorder %v1061, %v1059
        %v1063 = vsel %vm1062, %v710, -inf
        %v1064 = vsel %vm1062, %v759, -inf
        %v1065 = vsel %vm1062, %v808, -inf
        %v1066 = vsel %vm1062, %v857, -inf
        %v1067 = vsel %vm1062, %v906, -inf
        %v1068 = vsel %vm1062, %v955, -inf
        %v1069 = vsel %vm1062, %v1004, -inf
        %v1070 = vsel %vm1062, %v1053, -inf
        %v1071 = vsel %vm668, %v1063, -inf
        %1072 = vmax.xlane.f32.xlu0 %v1071
        %v1073 = vpop.xlane.xlu0 %1072
        %v1074 = vsel %vm668, %v1064, -inf
        %1075 = vmax.xlane.f32.xlu0 %v1074
        %v1076 = vpop.xlane.xlu0 %1075
        %v1077 = vsel %vm668, %v1065, -inf
        %1078 = vmax.xlane.f32.xlu0 %v1077
        %v1079 = vpop.xlane.xlu0 %1078
        %v1080 = vsel %vm668, %v1066, -inf
        %1081 = vmax.xlane.f32.xlu0 %v1080
        %v1082 = vpop.xlane.xlu0 %1081
        %v1083 = vsel %vm668, %v1067, -inf
        %1084 = vmax.xlane.f32.xlu0 %v1083
        %v1085 = vpop.xlane.xlu0 %1084
        %v1086 = vsel %vm668, %v1068, -inf
        %1087 = vmax.xlane.f32.xlu0 %v1086
        %v1088 = vpop.xlane.xlu0 %1087
        %v1089 = vsel %vm668, %v1069, -inf
        %1090 = vmax.xlane.f32.xlu0 %v1089
        %v1091 = vpop.xlane.xlu0 %1090
        %v1092 = vsel %vm668, %v1070, -inf
        %1093 = vmax.xlane.f32.xlu0 %v1092
        %v1094 = vpop.xlane.xlu0 %1093
        %v1095 = vsub.f32 %v1063, %v1073
        %v1096 = vsub.f32 %v1064, %v1076
        %v1097 = vsub.f32 %v1065, %v1079
        %v1098 = vsub.f32 %v1066, %v1082
        %v1099 = vsub.f32 %v1067, %v1085
        %v1100 = vsub.f32 %v1068, %v1088
        %v1101 = vsub.f32 %v1069, %v1091
        %v1102 = vsub.f32 %v1070, %v1094
        %v1103 = vmul.f32 %v1095, 1.442695
        %v1104 = vpow.pop %v1103
        %v1105 = vmul.f32 %v1096, 1.442695
        %v1106 = vpow.pop %v1105
        %v1107 = vmul.f32 %v1097, 1.442695
        %v1108 = vpow.pop %v1107
        %v1109 = vmul.f32 %v1098, 1.442695
        %v1110 = vpow.pop %v1109
        %v1111 = vmul.f32 %v1099, 1.442695
        %v1112 = vpow.pop %v1111
        %v1113 = vmul.f32 %v1100, 1.442695
        %v1114 = vpow.pop %v1113
        %v1115 = vmul.f32 %v1101, 1.442695
        %v1116 = vpow.pop %v1115
        %v1117 = vmul.f32 %v1102, 1.442695
        %v1118 = vpow.pop %v1117
        %v1119 = vsel %vm668, %v1104, 0.0
        %1120 = vadd.xlane.f32.xlu0 %v1119
        %v1121 = vpop.xlane.xlu0 %1120
        %v1122 = vsel %vm668, %v1106, 0.0
        %1123 = vadd.xlane.f32.xlu0 %v1122
        %v1124 = vpop.xlane.xlu0 %1123
        %v1125 = vsel %vm668, %v1108, 0.0
        %1126 = vadd.xlane.f32.xlu0 %v1125
        %v1127 = vpop.xlane.xlu0 %1126
        %v1128 = vsel %vm668, %v1110, 0.0
        %1129 = vadd.xlane.f32.xlu0 %v1128
        %v1130 = vpop.xlane.xlu0 %1129
        %v1131 = vsel %vm668, %v1112, 0.0
        %1132 = vadd.xlane.f32.xlu0 %v1131
        %v1133 = vpop.xlane.xlu0 %1132
        %v1134 = vsel %vm668, %v1114, 0.0
        %1135 = vadd.xlane.f32.xlu0 %v1134
        %v1136 = vpop.xlane.xlu0 %1135
        %v1137 = vsel %vm668, %v1116, 0.0
        %1138 = vadd.xlane.f32.xlu0 %v1137
        %v1139 = vpop.xlane.xlu0 %1138
        %v1140 = vsel %vm668, %v1118, 0.0
        %1141 = vadd.xlane.f32.xlu0 %v1140
        %v1142 = vpop.xlane.xlu0 %1141
        %v1143 = vrcp.pop %v1121
        %v1144 = vrcp.pop %v1124
        %v1145 = vrcp.pop %v1127
        %v1146 = vrcp.pop %v1130
        %v1147 = vrcp.pop %v1133
        %v1148 = vrcp.pop %v1136
        %v1149 = vrcp.pop %v1139
        %v1150 = vrcp.pop %v1142
        %v1151 = vmul.f32 %v1104, %v1143
        %v1152 = vmul.f32 %v1106, %v1144
        %v1153 = vmul.f32 %v1108, %v1145
        %v1154 = vmul.f32 %v1110, %v1146
        %v1155 = vmul.f32 %v1112, %v1147
        %v1156 = vmul.f32 %v1114, %v1148
        %v1157 = vmul.f32 %v1116, %v1149
        %v1158 = vmul.f32 %v1118, %v1150
        %v1159 = vpack.c.bf16 %v1151, %v1151
        %v1160 = vpack.c.bf16 %v1152, %v1152
        %v1161 = vpack.c.bf16 %v1153, %v1153
        %v1162 = vpack.c.bf16 %v1154, %v1154
        %v1163 = vpack.c.bf16 %v1155, %v1155
        %v1164 = vpack.c.bf16 %v1156, %v1156
        %v1165 = vpack.c.bf16 %v1157, %v1157
        %v1166 = vpack.c.bf16 %v1158, %v1158
        %1167 = vrot.lane.b32.xlu0 %v657, 64
        %v1168 = vpop.permute.xlu0 %1167
        %v1170 = vsel %vm668, %v1159, 0
        %vm1172 = vcmask 1043456
        %v1174 = vsel %vm1172, %v1168, 0
        %1176 = vmatprep.subr.bf16.mxu0 0
        %1177 = vmatpush1.bf16.msra.mxu0 %v1174
        %1178 = vmatprep.subr.bf16.mxu0 0
        %1179 = vmatpush1.bf16.msra.mxu0 0
        %1180 = vmatprep.subr.bf16.mxu0 0
        %1181 = vmatpush1.bf16.msra.mxu0 0
        %1182 = vmatprep.subr.bf16.mxu0 0
        %1183 = vmatpush1.bf16.msra.mxu0 0
        %1184 = vmatprep.subr.bf16.mxu0 0
        %1185 = vmatpush1.bf16.msra.mxu0 0
        %1186 = vmatprep.subr.bf16.mxu0 0
        %1187 = vmatpush1.bf16.msra.mxu0 0
        %1188 = vmatprep.subr.bf16.mxu0 0
        %1189 = vmatpush1.bf16.msra.mxu0 0
        %1190 = vmatprep.subr.bf16.mxu0 0
        %1191 = vmatpush1.bf16.msra.mxu0 0
        %1192 = vmatprep.subr.bf16.mxu0 0
        %1193 = vmatpush1.bf16.msra.mxu0 0
        %1194 = vmatprep.subr.bf16.mxu0 0
        %1195 = vmatpush1.bf16.msra.mxu0 0
        %1196 = vmatprep.subr.bf16.mxu0 0
        %1197 = vmatpush1.bf16.msra.mxu0 0
        %1198 = vmatprep.subr.bf16.mxu0 0
        %1199 = vmatpush1.bf16.msra.mxu0 0
        %1200 = vmatprep.subr.bf16.mxu0 0
        %1201 = vmatpush1.bf16.msra.mxu0 0
        %1202 = vmatprep.subr.bf16.mxu0 0
        %1203 = vmatpush1.bf16.msra.mxu0 0
        %1204 = vmatprep.subr.bf16.mxu0 0
        %1205 = vmatpush1.bf16.msra.mxu0 0
        %1206 = vmatprep.subr.bf16.mxu0 0
        %1207 = vmatpush1.bf16.msra.mxu0 0
        %1208 = vmatprep.mubr.bf16.mxu0 0
        %1209 = vmatmul.mubr.bf16.gmra.mrb[0].mxu0 %v1170
        %v1210 = vpop.f32.mrb[0].mxu0
        %v1211 = vadd.f32 0.0, %v1210
        %v1212 = vpop.f32.mrb[0].mxu0
        %v1213 = vpop.f32.mrb[0].mxu0
        %v1214 = vpop.f32.mrb[0].mxu0
        %1215 = vdwg.mxu0
        %1216 = vrot.lane.b32.xlu0 %v658, 64
        %v1217 = vpop.permute.xlu0 %1216
        %v1219 = vsel %vm668, %v1160, 0
        %v1222 = vsel %vm1172, %v1217, 0
        %1224 = vmatprep.subr.bf16.mxu0 0
        %1225 = vmatpush1.bf16.msra.mxu0 %v1222
        %1226 = vmatprep.subr.bf16.mxu0 0
        %1227 = vmatpush1.bf16.msra.mxu0 0
        %1228 = vmatprep.subr.bf16.mxu0 0
        %1229 = vmatpush1.bf16.msra.mxu0 0
        %1230 = vmatprep.subr.bf16.mxu0 0
        %1231 = vmatpush1.bf16.msra.mxu0 0
        %1232 = vmatprep.subr.bf16.mxu0 0
        %1233 = vmatpush1.bf16.msra.mxu0 0
        %1234 = vmatprep.subr.bf16.mxu0 0
        %1235 = vmatpush1.bf16.msra.mxu0 0
        %1236 = vmatprep.subr.bf16.mxu0 0
        %1237 = vmatpush1.bf16.msra.mxu0 0
        %1238 = vmatprep.subr.bf16.mxu0 0
        %1239 = vmatpush1.bf16.msra.mxu0 0
        %1240 = vmatprep.subr.bf16.mxu0 0
        %1241 = vmatpush1.bf16.msra.mxu0 0
        %1242 = vmatprep.subr.bf16.mxu0 0
        %1243 = vmatpush1.bf16.msra.mxu0 0
        %1244 = vmatprep.subr.bf16.mxu0 0
        %1245 = vmatpush1.bf16.msra.mxu0 0
        %1246 = vmatprep.subr.bf16.mxu0 0
        %1247 = vmatpush1.bf16.msra.mxu0 0
        %1248 = vmatprep.subr.bf16.mxu0 0
        %1249 = vmatpush1.bf16.msra.mxu0 0
        %1250 = vmatprep.subr.bf16.mxu0 0
        %1251 = vmatpush1.bf16.msra.mxu0 0
        %1252 = vmatprep.subr.bf16.mxu0 0
        %1253 = vmatpush1.bf16.msra.mxu0 0
        %1254 = vmatprep.subr.bf16.mxu0 0
        %1255 = vmatpush1.bf16.msra.mxu0 0
        %1256 = vmatprep.mubr.bf16.mxu0 0
        %1257 = vmatmul.mubr.bf16.gmra.mrb[0].mxu0 %v1219
        %v1258 = vpop.f32.mrb[0].mxu0
        %v1259 = vadd.f32 0.0, %v1258
        %v1260 = vpop.f32.mrb[0].mxu0
        %v1261 = vpop.f32.mrb[0].mxu0
        %v1262 = vpop.f32.mrb[0].mxu0
        %1263 = vdwg.mxu0
        %1264 = vrot.lane.b32.xlu0 %v659, 64
        %v1265 = vpop.permute.xlu0 %1264
        %v1267 = vsel %vm668, %v1161, 0
        %v1270 = vsel %vm1172, %v1265, 0
        %1272 = vmatprep.subr.bf16.mxu0 0
        %1273 = vmatpush1.bf16.msra.mxu0 %v1270
        %1274 = vmatprep.subr.bf16.mxu0 0
        %1275 = vmatpush1.bf16.msra.mxu0 0
        %1276 = vmatprep.subr.bf16.mxu0 0
        %1277 = vmatpush1.bf16.msra.mxu0 0
        %1278 = vmatprep.subr.bf16.mxu0 0
        %1279 = vmatpush1.bf16.msra.mxu0 0
        %1280 = vmatprep.subr.bf16.mxu0 0
        %1281 = vmatpush1.bf16.msra.mxu0 0
        %1282 = vmatprep.subr.bf16.mxu0 0
        %1283 = vmatpush1.bf16.msra.mxu0 0
        %1284 = vmatprep.subr.bf16.mxu0 0
        %1285 = vmatpush1.bf16.msra.mxu0 0
        %1286 = vmatprep.subr.bf16.mxu0 0
        %1287 = vmatpush1.bf16.msra.mxu0 0
        %1288 = vmatprep.subr.bf16.mxu0 0
        %1289 = vmatpush1.bf16.msra.mxu0 0
        %1290 = vmatprep.subr.bf16.mxu0 0
        %1291 = vmatpush1.bf16.msra.mxu0 0
        %1292 = vmatprep.subr.bf16.mxu0 0
        %1293 = vmatpush1.bf16.msra.mxu0 0
        %1294 = vmatprep.subr.bf16.mxu0 0
        %1295 = vmatpush1.bf16.msra.mxu0 0
        %1296 = vmatprep.subr.bf16.mxu0 0
        %1297 = vmatpush1.bf16.msra.mxu0 0
        %1298 = vmatprep.subr.bf16.mxu0 0
        %1299 = vmatpush1.bf16.msra.mxu0 0
        %1300 = vmatprep.subr.bf16.mxu0 0
        %1301 = vmatpush1.bf16.msra.mxu0 0
        %1302 = vmatprep.subr.bf16.mxu0 0
        %1303 = vmatpush1.bf16.msra.mxu0 0
        %1304 = vmatprep.mubr.bf16.mxu0 0
        %1305 = vmatmul.mubr.bf16.gmra.mrb[0].mxu0 %v1267
        %v1306 = vpop.f32.mrb[0].mxu0
        %v1307 = vadd.f32 0.0, %v1306
        %v1308 = vpop.f32.mrb[0].mxu0
        %v1309 = vpop.f32.mrb[0].mxu0
        %v1310 = vpop.f32.mrb[0].mxu0
        %1311 = vdwg.mxu0
        %1312 = vrot.lane.b32.xlu0 %v660, 64
        %v1313 = vpop.permute.xlu0 %1312
        %v1315 = vsel %vm668, %v1162, 0
        %v1318 = vsel %vm1172, %v1313, 0
        %1320 = vmatprep.subr.bf16.mxu0 0
        %1321 = vmatpush1.bf16.msra.mxu0 %v1318
        %1322 = vmatprep.subr.bf16.mxu0 0
        %1323 = vmatpush1.bf16.msra.mxu0 0
        %1324 = vmatprep.subr.bf16.mxu0 0
        %1325 = vmatpush1.bf16.msra.mxu0 0
        %1326 = vmatprep.subr.bf16.mxu0 0
        %1327 = vmatpush1.bf16.msra.mxu0 0
        %1328 = vmatprep.subr.bf16.mxu0 0
        %1329 = vmatpush1.bf16.msra.mxu0 0
        %1330 = vmatprep.subr.bf16.mxu0 0
        %1331 = vmatpush1.bf16.msra.mxu0 0
        %1332 = vmatprep.subr.bf16.mxu0 0
        %1333 = vmatpush1.bf16.msra.mxu0 0
        %1334 = vmatprep.subr.bf16.mxu0 0
        %1335 = vmatpush1.bf16.msra.mxu0 0
        %1336 = vmatprep.subr.bf16.mxu0 0
        %1337 = vmatpush1.bf16.msra.mxu0 0
        %1338 = vmatprep.subr.bf16.mxu0 0
        %1339 = vmatpush1.bf16.msra.mxu0 0
        %1340 = vmatprep.subr.bf16.mxu0 0
        %1341 = vmatpush1.bf16.msra.mxu0 0
        %1342 = vmatprep.subr.bf16.mxu0 0
        %1343 = vmatpush1.bf16.msra.mxu0 0
        %1344 = vmatprep.subr.bf16.mxu0 0
        %1345 = vmatpush1.bf16.msra.mxu0 0
        %1346 = vmatprep.subr.bf16.mxu0 0
        %1347 = vmatpush1.bf16.msra.mxu0 0
        %1348 = vmatprep.subr.bf16.mxu0 0
        %1349 = vmatpush1.bf16.msra.mxu0 0
        %1350 = vmatprep.subr.bf16.mxu0 0
        %1351 = vmatpush1.bf16.msra.mxu0 0
        %1352 = vmatprep.mubr.bf16.mxu0 0
        %1353 = vmatmul.mubr.bf16.gmra.mrb[0].mxu0 %v1315
        %v1354 = vpop.f32.mrb[0].mxu0
        %v1355 = vadd.f32 0.0, %v1354
        %v1356 = vpop.f32.mrb[0].mxu0
        %v1357 = vpop.f32.mrb[0].mxu0
        %v1358 = vpop.f32.mrb[0].mxu0
        %1359 = vdwg.mxu0
        %1360 = vrot.lane.b32.xlu0 %v661, 64
        %v1361 = vpop.permute.xlu0 %1360
        %v1363 = vsel %vm668, %v1163, 0
        %v1366 = vsel %vm1172, %v1361, 0
        %1368 = vmatprep.subr.bf16.mxu0 0
        %1369 = vmatpush1.bf16.msra.mxu0 %v1366
        %1370 = vmatprep.subr.bf16.mxu0 0
        %1371 = vmatpush1.bf16.msra.mxu0 0
        %1372 = vmatprep.subr.bf16.mxu0 0
        %1373 = vmatpush1.bf16.msra.mxu0 0
        %1374 = vmatprep.subr.bf16.mxu0 0
        %1375 = vmatpush1.bf16.msra.mxu0 0
        %1376 = vmatprep.subr.bf16.mxu0 0
        %1377 = vmatpush1.bf16.msra.mxu0 0
        %1378 = vmatprep.subr.bf16.mxu0 0
        %1379 = vmatpush1.bf16.msra.mxu0 0
        %1380 = vmatprep.subr.bf16.mxu0 0
        %1381 = vmatpush1.bf16.msra.mxu0 0
        %1382 = vmatprep.subr.bf16.mxu0 0
        %1383 = vmatpush1.bf16.msra.mxu0 0
        %1384 = vmatprep.subr.bf16.mxu0 0
        %1385 = vmatpush1.bf16.msra.mxu0 0
        %1386 = vmatprep.subr.bf16.mxu0 0
        %1387 = vmatpush1.bf16.msra.mxu0 0
        %1388 = vmatprep.subr.bf16.mxu0 0
        %1389 = vmatpush1.bf16.msra.mxu0 0
        %1390 = vmatprep.subr.bf16.mxu0 0
        %1391 = vmatpush1.bf16.msra.mxu0 0
        %1392 = vmatprep.subr.bf16.mxu0 0
        %1393 = vmatpush1.bf16.msra.mxu0 0
        %1394 = vmatprep.subr.bf16.mxu0 0
        %1395 = vmatpush1.bf16.msra.mxu0 0
        %1396 = vmatprep.subr.bf16.mxu0 0
        %1397 = vmatpush1.bf16.msra.mxu0 0
        %1398 = vmatprep.subr.bf16.mxu0 0
        %1399 = vmatpush1.bf16.msra.mxu0 0
        %1400 = vmatprep.mubr.bf16.mxu0 0
        %1401 = vmatmul.mubr.bf16.gmra.mrb[0].mxu0 %v1363
        %v1402 = vpop.f32.mrb[0].mxu0
        %v1403 = vadd.f32 0.0, %v1402
        %v1404 = vpop.f32.mrb[0].mxu0
        %v1405 = vpop.f32.mrb[0].mxu0
        %v1406 = vpop.f32.mrb[0].mxu0
        %1407 = vdwg.mxu0
        %1408 = vrot.lane.b32.xlu0 %v662, 64
        %v1409 = vpop.permute.xlu0 %1408
        %v1411 = vsel %vm668, %v1164, 0
        %v1414 = vsel %vm1172, %v1409, 0
        %1416 = vmatprep.subr.bf16.mxu0 0
        %1417 = vmatpush1.bf16.msra.mxu0 %v1414
        %1418 = vmatprep.subr.bf16.mxu0 0
        %1419 = vmatpush1.bf16.msra.mxu0 0
        %1420 = vmatprep.subr.bf16.mxu0 0
        %1421 = vmatpush1.bf16.msra.mxu0 0
        %1422 = vmatprep.subr.bf16.mxu0 0
        %1423 = vmatpush1.bf16.msra.mxu0 0
        %1424 = vmatprep.subr.bf16.mxu0 0
        %1425 = vmatpush1.bf16.msra.mxu0 0
        %1426 = vmatprep.subr.bf16.mxu0 0
        %1427 = vmatpush1.bf16.msra.mxu0 0
        %1428 = vmatprep.subr.bf16.mxu0 0
        %1429 = vmatpush1.bf16.msra.mxu0 0
        %1430 = vmatprep.subr.bf16.mxu0 0
        %1431 = vmatpush1.bf16.msra.mxu0 0
        %1432 = vmatprep.subr.bf16.mxu0 0
        %1433 = vmatpush1.bf16.msra.mxu0 0
        %1434 = vmatprep.subr.bf16.mxu0 0
        %1435 = vmatpush1.bf16.msra.mxu0 0
        %1436 = vmatprep.subr.bf16.mxu0 0
        %1437 = vmatpush1.bf16.msra.mxu0 0
        %1438 = vmatprep.subr.bf16.mxu0 0
        %1439 = vmatpush1.bf16.msra.mxu0 0
        %1440 = vmatprep.subr.bf16.mxu0 0
        %1441 = vmatpush1.bf16.msra.mxu0 0
        %1442 = vmatprep.subr.bf16.mxu0 0
        %1443 = vmatpush1.bf16.msra.mxu0 0
        %1444 = vmatprep.subr.bf16.mxu0 0
        %1445 = vmatpush1.bf16.msra.mxu0 0
        %1446 = vmatprep.subr.bf16.mxu0 0
        %1447 = vmatpush1.bf16.msra.mxu0 0
        %1448 = vmatprep.mubr.bf16.mxu0 0
        %1449 = vmatmul.mubr.bf16.gmra.mrb[0].mxu0 %v1411
        %v1450 = vpop.f32.mrb[0].mxu0
        %v1451 = vadd.f32 0.0, %v1450
        %v1452 = vpop.f32.mrb[0].mxu0
        %v1453 = vpop.f32.mrb[0].mxu0
        %v1454 = vpop.f32.mrb[0].mxu0
        %1455 = vdwg.mxu0
        %1456 = vrot.lane.b32.xlu0 %v663, 64
        %v1457 = vpop.permute.xlu0 %1456
        %v1459 = vsel %vm668, %v1165, 0
        %v1462 = vsel %vm1172, %v1457, 0
        %1464 = vmatprep.subr.bf16.mxu0 0
        %1465 = vmatpush1.bf16.msra.mxu0 %v1462
        %1466 = vmatprep.subr.bf16.mxu0 0
        %1467 = vmatpush1.bf16.msra.mxu0 0
        %1468 = vmatprep.subr.bf16.mxu0 0
        %1469 = vmatpush1.bf16.msra.mxu0 0
        %1470 = vmatprep.subr.bf16.mxu0 0
        %1471 = vmatpush1.bf16.msra.mxu0 0
        %1472 = vmatprep.subr.bf16.mxu0 0
        %1473 = vmatpush1.bf16.msra.mxu0 0
        %1474 = vmatprep.subr.bf16.mxu0 0
        %1475 = vmatpush1.bf16.msra.mxu0 0
        %1476 = vmatprep.subr.bf16.mxu0 0
        %1477 = vmatpush1.bf16.msra.mxu0 0
        %1478 = vmatprep.subr.bf16.mxu0 0
        %1479 = vmatpush1.bf16.msra.mxu0 0
        %1480 = vmatprep.subr.bf16.mxu0 0
        %1481 = vmatpush1.bf16.msra.mxu0 0
        %1482 = vmatprep.subr.bf16.mxu0 0
        %1483 = vmatpush1.bf16.msra.mxu0 0
        %1484 = vmatprep.subr.bf16.mxu0 0
        %1485 = vmatpush1.bf16.msra.mxu0 0
        %1486 = vmatprep.subr.bf16.mxu0 0
        %1487 = vmatpush1.bf16.msra.mxu0 0
        %1488 = vmatprep.subr.bf16.mxu0 0
        %1489 = vmatpush1.bf16.msra.mxu0 0
        %1490 = vmatprep.subr.bf16.mxu0 0
        %1491 = vmatpush1.bf16.msra.mxu0 0
        %1492 = vmatprep.subr.bf16.mxu0 0
        %1493 = vmatpush1.bf16.msra.mxu0 0
        %1494 = vmatprep.subr.bf16.mxu0 0
        %1495 = vmatpush1.bf16.msra.mxu0 0
        %1496 = vmatprep.mubr.bf16.mxu0 0
        %1497 = vmatmul.mubr.bf16.gmra.mrb[0].mxu0 %v1459
        %v1498 = vpop.f32.mrb[0].mxu0
        %v1499 = vadd.f32 0.0, %v1498
        %v1500 = vpop.f32.mrb[0].mxu0
        %v1501 = vpop.f32.mrb[0].mxu0
        %v1502 = vpop.f32.mrb[0].mxu0
        %1503 = vdwg.mxu0
        %1504 = vrot.lane.b32.xlu0 %v664, 64
        %v1505 = vpop.permute.xlu0 %1504
        %v1507 = vsel %vm668, %v1166, 0
        %v1510 = vsel %vm1172, %v1505, 0
        %1512 = vmatprep.subr.bf16.mxu0 0
        %1513 = vmatpush1.bf16.msra.mxu0 %v1510
        %1514 = vmatprep.subr.bf16.mxu0 0
        %1515 = vmatpush1.bf16.msra.mxu0 0
        %1516 = vmatprep.subr.bf16.mxu0 0
        %1517 = vmatpush1.bf16.msra.mxu0 0
        %1518 = vmatprep.subr.bf16.mxu0 0
        %1519 = vmatpush1.bf16.msra.mxu0 0
        %1520 = vmatprep.subr.bf16.mxu0 0
        %1521 = vmatpush1.bf16.msra.mxu0 0
        %1522 = vmatprep.subr.bf16.mxu0 0
        %1523 = vmatpush1.bf16.msra.mxu0 0
        %1524 = vmatprep.subr.bf16.mxu0 0
        %1525 = vmatpush1.bf16.msra.mxu0 0
        %1526 = vmatprep.subr.bf16.mxu0 0
        %1527 = vmatpush1.bf16.msra.mxu0 0
        %1528 = vmatprep.subr.bf16.mxu0 0
        %1529 = vmatpush1.bf16.msra.mxu0 0
        %1530 = vmatprep.subr.bf16.mxu0 0
        %1531 = vmatpush1.bf16.msra.mxu0 0
        %1532 = vmatprep.subr.bf16.mxu0 0
        %1533 = vmatpush1.bf16.msra.mxu0 0
        %1534 = vmatprep.subr.bf16.mxu0 0
        %1535 = vmatpush1.bf16.msra.mxu0 0
        %1536 = vmatprep.subr.bf16.mxu0 0
        %1537 = vmatpush1.bf16.msra.mxu0 0
        %1538 = vmatprep.subr.bf16.mxu0 0
        %1539 = vmatpush1.bf16.msra.mxu0 0
        %1540 = vmatprep.subr.bf16.mxu0 0
        %1541 = vmatpush1.bf16.msra.mxu0 0
        %1542 = vmatprep.subr.bf16.mxu0 0
        %1543 = vmatpush1.bf16.msra.mxu0 0
        %1544 = vmatprep.mubr.bf16.mxu0 0
        %1545 = vmatmul.mubr.bf16.gmra.mrb[0].mxu0 %v1507
        %v1546 = vpop.f32.mrb[0].mxu0
        %v1547 = vadd.f32 0.0, %v1546
        %v1548 = vpop.f32.mrb[0].mxu0
        %v1549 = vpop.f32.mrb[0].mxu0
        %v1550 = vpop.f32.mrb[0].mxu0
        %1551 = vdwg.mxu0
        %1552 = vst.msk [vmem:[#allocation3] sm:$0xff] %vm668, %v1211
        %1554 = vrot.lane.b32.xlu0 %v1259, 8
        %v1555 = vpop.permute.xlu0 %1554
        %vm1557 = vcmask 130112
        %1558 = vst.msk [vmem:[#allocation3] sm:$0xff] %vm1557, %v1555
        %1560 = vrot.lane.b32.xlu0 %v1307, 16
        %v1561 = vpop.permute.xlu0 %1560
        %vm1563 = vcmask 195712
        %1564 = vst.msk [vmem:[#allocation3] sm:$0xff] %vm1563, %v1561
        %1566 = vrot.lane.b32.xlu0 %v1355, 24
        %v1567 = vpop.permute.xlu0 %1566
        %vm1569 = vcmask 261312
        %1570 = vst.msk [vmem:[#allocation3] sm:$0xff] %vm1569, %v1567
        %1571 = vst.msk [vmem:[#allocation3 + $0x8] sm:$0xff] %vm668, %v1403
        %1573 = vrot.lane.b32.xlu0 %v1451, 8
        %v1574 = vpop.permute.xlu0 %1573
        %1576 = vst.msk [vmem:[#allocation3 + $0x8] sm:$0xff] %vm1557, %v1574
        %1578 = vrot.lane.b32.xlu0 %v1499, 16
        %v1579 = vpop.permute.xlu0 %1578
        %1581 = vst.msk [vmem:[#allocation3 + $0x8] sm:$0xff] %vm1563, %v1579
        %1583 = vrot.lane.b32.xlu0 %v1547, 24
        %v1584 = vpop.permute.xlu0 %1583
        %1586 = vst.msk [vmem:[#allocation3 + $0x8] sm:$0xff] %vm1569, %v1584
        %v1587 = vld [vmem:[#allocation3] sm:$0xff]
        %v1588 = vld [vmem:[#allocation3 + $0x8] sm:$0xff]
        %v1589 = vpack.c.bf16 %v1588, %v1587
        %v1590 = vld [vmem:[%s448] sm:$0xf]
        %v1591 = vld [vmem:[%s448 + $0x4] sm:$0xf]
        %v1592 = vld [vmem:[%s448 + $0x8] sm:$0xf]
        %v1593 = vld [vmem:[%s448 + $0xc] sm:$0xf]
        %v1594 = vlaneseq
        %v1595 = vshrl.u32 %v1594, 7
        %v1596 = vsub.s32 0, %v1595
        %v1597 = vrot.slane %v552, %v1596
        %v1602 = vunpack.c.l.b16 %v1590
        %v1603 = vunpack.c.l.b16 %v1591
        %v1604 = vunpack.c.l.b16 %v1592
        %v1605 = vunpack.c.l.b16 %v1593
        %v1606 = vpack.c.b16 %v1603, %v1602
        %v1607 = vpack.c.b16 %v1605, %v1604
        %v1611 = vsel %vm576, %v1589, 0
        %1613 = vmatprep.subr.bf16.mxu0 0
        %1614 = vmatpush1.bf16.msra.mxu0 %v1606
        %1615 = vmatprep.subr.bf16.mxu0 0
        %1616 = vmatpush1.bf16.msra.mxu0 %v1607
        %1617 = vmatprep.subr.bf16.mxu0 0
        %1618 = vmatpush1.bf16.msra.mxu0 0
        %1619 = vmatprep.subr.bf16.mxu0 0
        %1620 = vmatpush1.bf16.msra.mxu0 0
        %1621 = vmatprep.subr.bf16.mxu0 0
        %1622 = vmatpush1.bf16.msra.mxu0 0
        %1623 = vmatprep.subr.bf16.mxu0 0
        %1624 = vmatpush1.bf16.msra.mxu0 0
        %1625 = vmatprep.subr.bf16.mxu0 0
        %1626 = vmatpush1.bf16.msra.mxu0 0
        %1627 = vmatprep.subr.bf16.mxu0 0
        %1628 = vmatpush1.bf16.msra.mxu0 0
        %1629 = vmatprep.subr.bf16.mxu0 0
        %1630 = vmatpush1.bf16.msra.mxu0 0
        %1631 = vmatprep.subr.bf16.mxu0 0
        %1632 = vmatpush1.bf16.msra.mxu0 0
        %1633 = vmatprep.subr.bf16.mxu0 0
        %1634 = vmatpush1.bf16.msra.mxu0 0
        %1635 = vmatprep.subr.bf16.mxu0 0
        %1636 = vmatpush1.bf16.msra.mxu0 0
        %1637 = vmatprep.subr.bf16.mxu0 0
        %1638 = vmatpush1.bf16.msra.mxu0 0
        %1639 = vmatprep.subr.bf16.mxu0 0
        %1640 = vmatpush1.bf16.msra.mxu0 0
        %1641 = vmatprep.subr.bf16.mxu0 0
        %1642 = vmatpush1.bf16.msra.mxu0 0
        %1643 = vmatprep.subr.bf16.mxu0 0
        %1644 = vmatpush1.bf16.msra.mxu0 0
        %1645 = vmatprep.mubr.bf16.mxu0 0
        %1646 = vmatmul.mubr.bf16.gmra.mrb[0].mxu0 %v1611
        %v1647 = vpop.f32.mrb[0].mxu0
        %v1648 = vadd.f32 %v1597, %v1647
        %v1649 = vpop.f32.mrb[0].mxu0
        %v1650 = vpop.f32.mrb[0].mxu0
        %v1651 = vadd.f32 %v1597, %v1650
        %v1652 = vpop.f32.mrb[0].mxu0
        %1653 = vdwg.mxu0
        %v1654 = vmax.f32 %v1648, 0.0
        %v1655 = vmax.f32 %v1651, 0.0
        %v1656 = vpack.c.bf16 %v1655, %v1654
        %v1657 = vld [vmem:[%s457] sm:$0xf]
        %v1658 = vld [vmem:[%s457 + $0x4] sm:$0xf]
        %v1659 = vld [vmem:[%s457 + $0x8] sm:$0xf]
        %v1660 = vld [vmem:[%s457 + $0xc] sm:$0xf]
        %v1661 = vlaneseq
        %v1662 = vshrl.u32 %v1661, 7
        %v1663 = vsub.s32 1, %v1662
        %v1664 = vrot.slane %v552, %v1663
        %v1669 = vunpack.c.l.b16 %v1657
        %v1670 = vunpack.c.l.b16 %v1658
        %v1671 = vunpack.c.l.b16 %v1659
        %v1672 = vunpack.c.l.b16 %v1660
        %v1673 = vpack.c.b16 %v1670, %v1669
        %v1674 = vpack.c.b16 %v1672, %v1671
        %v1678 = vsel %vm576, %v1656, 0
        %1680 = vmatprep.subr.bf16.mxu0 0
        %1681 = vmatpush1.bf16.msra.mxu0 %v1673
        %1682 = vmatprep.subr.bf16.mxu0 0
        %1683 = vmatpush1.bf16.msra.mxu0 %v1674
        %1684 = vmatprep.subr.bf16.mxu0 0
        %1685 = vmatpush1.bf16.msra.mxu0 0
        %1686 = vmatprep.subr.bf16.mxu0 0
        %1687 = vmatpush1.bf16.msra.mxu0 0
        %1688 = vmatprep.subr.bf16.mxu0 0
        %1689 = vmatpush1.bf16.msra.mxu0 0
        %1690 = vmatprep.subr.bf16.mxu0 0
        %1691 = vmatpush1.bf16.msra.mxu0 0
        %1692 = vmatprep.subr.bf16.mxu0 0
        %1693 = vmatpush1.bf16.msra.mxu0 0
        %1694 = vmatprep.subr.bf16.mxu0 0
        %1695 = vmatpush1.bf16.msra.mxu0 0
        %1696 = vmatprep.subr.bf16.mxu0 0
        %1697 = vmatpush1.bf16.msra.mxu0 0
        %1698 = vmatprep.subr.bf16.mxu0 0
        %1699 = vmatpush1.bf16.msra.mxu0 0
        %1700 = vmatprep.subr.bf16.mxu0 0
        %1701 = vmatpush1.bf16.msra.mxu0 0
        %1702 = vmatprep.subr.bf16.mxu0 0
        %1703 = vmatpush1.bf16.msra.mxu0 0
        %1704 = vmatprep.subr.bf16.mxu0 0
        %1705 = vmatpush1.bf16.msra.mxu0 0
        %1706 = vmatprep.subr.bf16.mxu0 0
        %1707 = vmatpush1.bf16.msra.mxu0 0
        %1708 = vmatprep.subr.bf16.mxu0 0
        %1709 = vmatpush1.bf16.msra.mxu0 0
        %1710 = vmatprep.subr.bf16.mxu0 0
        %1711 = vmatpush1.bf16.msra.mxu0 0
        %1712 = vmatprep.mubr.bf16.mxu0 0
        %1713 = vmatmul.mubr.bf16.gmra.mrb[0].mxu0 %v1678
        %v1714 = vpop.f32.mrb[0].mxu0
        %v1715 = vadd.f32 %v1664, %v1714
        %v1716 = vpop.f32.mrb[0].mxu0
        %v1717 = vpop.f32.mrb[0].mxu0
        %v1718 = vadd.f32 %v1664, %v1717
        %v1719 = vpop.f32.mrb[0].mxu0
        %1720 = vdwg.mxu0
        %v1721 = vadd.f32 %v1715, %v549
        %v1722 = vadd.f32 %v1718, %v550
        %v1723 = vsel %vm576, %v1721, 0.0
        %1724 = vadd.xlane.f32.xlu0 %v1723
        %v1725 = vpop.xlane.xlu0 %1724
        %v1726 = vsel %vm576, %v1722, 0.0
        %1727 = vadd.xlane.f32.xlu0 %v1726
        %v1728 = vpop.xlane.xlu0 %1727
        %v1729 = vrcp.pop 32.0
        %v1730 = vmul.f32 %v1725, %v1729
        %v1731 = vmul.f32 %v1728, %v1729
        %v1732 = vsub.f32 %v1721, %v1730
        %v1733 = vsub.f32 %v1722, %v1731
        %v1734 = vmul.f32 %v1732, %v1732
        %v1735 = vmul.f32 %v1733, %v1733
        %v1736 = vsel %vm576, %v1734, 0.0
        %1737 = vadd.xlane.f32.xlu0 %v1736
        %v1738 = vpop.xlane.xlu0 %1737
        %v1739 = vsel %vm576, %v1735, 0.0
        %1740 = vadd.xlane.f32.xlu0 %v1739
        %v1741 = vpop.xlane.xlu0 %1740
        %v1742 = vmul.f32 %v1738, %v1729
        %v1743 = vmul.f32 %v1741, %v1729
        %v1744 = vadd.f32 %v1742, 1e-05
        %v1745 = vadd.f32 %v1743, 1e-05
        %v1746 = vrsqrt.pop %v1744
        %v1747 = vrsqrt.pop %v1745
        %v1748 = vmul.f32 %v1732, %v1746
        %v1749 = vmul.f32 %v1733, %v1747
        %v1750 = vlaneseq
        %v1751 = vshrl.u32 %v1750, 7
        %v1752 = vsub.s32 2, %v1751
        %v1753 = vrot.slane %v552, %v1752
        %v1754 = vmul.f32 %v1748, %v1753
        %v1755 = vmul.f32 %v1749, %v1753
        %v1756 = vlaneseq
        %v1757 = vshrl.u32 %v1756, 7
        %v1758 = vsub.s32 3, %v1757
        %v1759 = vrot.slane %v552, %v1758
        %v1760 = vadd.f32 %v1754, %v1759
        %v1761 = vadd.f32 %v1755, %v1759
        %v1762 = vpack.c.bf16 %v1761, %v1760
        %v1763 = vld [vmem:[%s466] sm:$0xf]
        %v1764 = vld [vmem:[%s466 + $0x4] sm:$0xf]
        %v1765 = vld [vmem:[%s466 + $0x8] sm:$0xf]
        %v1766 = vld [vmem:[%s466 + $0xc] sm:$0xf]
        %v1767 = vlaneseq
        %v1768 = vshrl.u32 %v1767, 7
        %v1769 = vsub.s32 4, %v1768
        %v1770 = vrot.slane %v552, %v1769
        %v1775 = vunpack.c.l.b16 %v1763
        %v1776 = vunpack.c.l.b16 %v1764
        %v1777 = vunpack.c.l.b16 %v1765
        %v1778 = vunpack.c.l.b16 %v1766
        %v1779 = vpack.c.b16 %v1776, %v1775
        %v1780 = vpack.c.b16 %v1778, %v1777
        %v1784 = vsel %vm576, %v1762, 0
        %1786 = vmatprep.subr.bf16.mxu0 0
        %1787 = vmatpush1.bf16.msra.mxu0 %v1779
        %1788 = vmatprep.subr.bf16.mxu0 0
        %1789 = vmatpush1.bf16.msra.mxu0 %v1780
        %1790 = vmatprep.subr.bf16.mxu0 0
        %1791 = vmatpush1.bf16.msra.mxu0 0
        %1792 = vmatprep.subr.bf16.mxu0 0
        %1793 = vmatpush1.bf16.msra.mxu0 0
        %1794 = vmatprep.subr.bf16.mxu0 0
        %1795 = vmatpush1.bf16.msra.mxu0 0
        %1796 = vmatprep.subr.bf16.mxu0 0
        %1797 = vmatpush1.bf16.msra.mxu0 0
        %1798 = vmatprep.subr.bf16.mxu0 0
        %1799 = vmatpush1.bf16.msra.mxu0 0
        %1800 = vmatprep.subr.bf16.mxu0 0
        %1801 = vmatpush1.bf16.msra.mxu0 0
        %1802 = vmatprep.subr.bf16.mxu0 0
        %1803 = vmatpush1.bf16.msra.mxu0 0
        %1804 = vmatprep.subr.bf16.mxu0 0
        %1805 = vmatpush1.bf16.msra.mxu0 0
        %1806 = vmatprep.subr.bf16.mxu0 0
        %1807 = vmatpush1.bf16.msra.mxu0 0
        %1808 = vmatprep.subr.bf16.mxu0 0
        %1809 = vmatpush1.bf16.msra.mxu0 0
        %1810 = vmatprep.subr.bf16.mxu0 0
        %1811 = vmatpush1.bf16.msra.mxu0 0
        %1812 = vmatprep.subr.bf16.mxu0 0
        %1813 = vmatpush1.bf16.msra.mxu0 0
        %1814 = vmatprep.subr.bf16.mxu0 0
        %1815 = vmatpush1.bf16.msra.mxu0 0
        %1816 = vmatprep.subr.bf16.mxu0 0
        %1817 = vmatpush1.bf16.msra.mxu0 0
        %1818 = vmatprep.mubr.bf16.mxu0 0
        %1819 = vmatmul.mubr.bf16.gmra.mrb[0].mxu0 %v1784
        %v1820 = vpop.f32.mrb[0].mxu0
        %v1821 = vadd.f32 %v1770, %v1820
        %v1822 = vpop.f32.mrb[0].mxu0
        %v1823 = vpop.f32.mrb[0].mxu0
        %v1824 = vadd.f32 %v1770, %v1823
        %v1825 = vpop.f32.mrb[0].mxu0
        %1826 = vdwg.mxu0
        %v1827 = vmax.f32 %v1821, 0.0
        %v1828 = vmax.f32 %v1824, 0.0
        %v1829 = vpack.c.bf16 %v1828, %v1827
        %v1830 = vld [vmem:[%s475] sm:$0xf]
        %v1831 = vld [vmem:[%s475 + $0x4] sm:$0xf]
        %v1832 = vld [vmem:[%s475 + $0x8] sm:$0xf]
        %v1833 = vld [vmem:[%s475 + $0xc] sm:$0xf]
        %v1834 = vlaneseq
        %v1835 = vshrl.u32 %v1834, 7
        %v1836 = vsub.s32 5, %v1835
        %v1837 = vrot.slane %v552, %v1836
        %v1842 = vunpack.c.l.b16 %v1830
        %v1843 = vunpack.c.l.b16 %v1831
        %v1844 = vunpack.c.l.b16 %v1832
        %v1845 = vunpack.c.l.b16 %v1833
        %v1846 = vpack.c.b16 %v1843, %v1842
        %v1847 = vpack.c.b16 %v1845, %v1844
        %v1851 = vsel %vm576, %v1829, 0
        %1853 = vmatprep.subr.bf16.mxu0 0
        %1854 = vmatpush1.bf16.msra.mxu0 %v1846
        %1855 = vmatprep.subr.bf16.mxu0 0
        %1856 = vmatpush1.bf16.msra.mxu0 %v1847
        %1857 = vmatprep.subr.bf16.mxu0 0
        %1858 = vmatpush1.bf16.msra.mxu0 0
        %1859 = vmatprep.subr.bf16.mxu0 0
        %1860 = vmatpush1.bf16.msra.mxu0 0
        %1861 = vmatprep.subr.bf16.mxu0 0
        %1862 = vmatpush1.bf16.msra.mxu0 0
        %1863 = vmatprep.subr.bf16.mxu0 0
        %1864 = vmatpush1.bf16.msra.mxu0 0
        %1865 = vmatprep.subr.bf16.mxu0 0
        %1866 = vmatpush1.bf16.msra.mxu0 0
        %1867 = vmatprep.subr.bf16.mxu0 0
        %1868 = vmatpush1.bf16.msra.mxu0 0
        %1869 = vmatprep.subr.bf16.mxu0 0
        %1870 = vmatpush1.bf16.msra.mxu0 0
        %1871 = vmatprep.subr.bf16.mxu0 0
        %1872 = vmatpush1.bf16.msra.mxu0 0
        %1873 = vmatprep.subr.bf16.mxu0 0
        %1874 = vmatpush1.bf16.msra.mxu0 0
        %1875 = vmatprep.subr.bf16.mxu0 0
        %1876 = vmatpush1.bf16.msra.mxu0 0
        %1877 = vmatprep.subr.bf16.mxu0 0
        %1878 = vmatpush1.bf16.msra.mxu0 0
        %1879 = vmatprep.subr.bf16.mxu0 0
        %1880 = vmatpush1.bf16.msra.mxu0 0
        %1881 = vmatprep.subr.bf16.mxu0 0
        %1882 = vmatpush1.bf16.msra.mxu0 0
        %1883 = vmatprep.subr.bf16.mxu0 0
        %1884 = vmatpush1.bf16.msra.mxu0 0
        %1885 = vmatprep.mubr.bf16.mxu0 0
        %1886 = vmatmul.mubr.bf16.gmra.mrb[0].mxu0 %v1851
        %v1887 = vpop.f32.mrb[0].mxu0
        %v1888 = vadd.f32 %v1837, %v1887
        %v1889 = vpop.f32.mrb[0].mxu0
        %v1890 = vpop.f32.mrb[0].mxu0
        %v1891 = vadd.f32 %v1837, %v1890
        %v1892 = vpop.f32.mrb[0].mxu0
        %1893 = vdwg.mxu0
        %v1894 = vadd.f32 %v1760, %v1888
        %v1895 = vadd.f32 %v1761, %v1891
        %v1896 = vsel %vm576, %v1894, 0.0
        %1897 = vadd.xlane.f32.xlu0 %v1896
        %v1898 = vpop.xlane.xlu0 %1897
        %v1899 = vsel %vm576, %v1895, 0.0
        %1900 = vadd.xlane.f32.xlu0 %v1899
        %v1901 = vpop.xlane.xlu0 %1900
        %v1902 = vmul.f32 %v1898, %v1729
        %v1903 = vmul.f32 %v1901, %v1729
        %v1904 = vsub.f32 %v1894, %v1902
        %v1905 = vsub.f32 %v1895, %v1903
        %v1906 = vmul.f32 %v1904, %v1904
        %v1907 = vmul.f32 %v1905, %v1905
        %v1908 = vsel %vm576, %v1906, 0.0
        %1909 = vadd.xlane.f32.xlu0 %v1908
        %v1910 = vpop.xlane.xlu0 %1909
        %v1911 = vsel %vm576, %v1907, 0.0
        %1912 = vadd.xlane.f32.xlu0 %v1911
        %v1913 = vpop.xlane.xlu0 %1912
        %v1914 = vmul.f32 %v1910, %v1729
        %v1915 = vmul.f32 %v1913, %v1729
        %v1916 = vadd.f32 %v1914, 1e-05
        %v1917 = vadd.f32 %v1915, 1e-05
        %v1918 = vrsqrt.pop %v1916
        %v1919 = vrsqrt.pop %v1917
        %v1920 = vmul.f32 %v1904, %v1918
        %v1921 = vmul.f32 %v1905, %v1919
        %v1922 = vlaneseq
        %v1923 = vshrl.u32 %v1922, 7
        %v1924 = vsub.s32 6, %v1923
        %v1925 = vrot.slane %v552, %v1924
        %v1926 = vmul.f32 %v1920, %v1925
        %v1927 = vmul.f32 %v1921, %v1925
        %v1928 = vlaneseq
        %v1929 = vshrl.u32 %v1928, 7
        %v1930 = vsub.s32 7, %v1929
        %v1931 = vrot.slane %v552, %v1930
        %v1932 = vadd.f32 %v1926, %v1931
        %v1933 = vadd.f32 %v1927, %v1931
        %1934 = vst.msk [vmem:[#allocation2] sm:$0xff] %vm576, %v1932
        %1935 = vst.msk [vmem:[#allocation2 + $0x8] sm:$0xff] %vm576, %v1933
        %1936 = vst.msk [vmem:[#allocation15] sm:$0xff] %vm576, %v1932
        %1937 = vst.msk [vmem:[#allocation15 + $0x8] sm:$0xff] %vm576, %v1933
        // Predicated region
        $region81: #{tpu_custom_call.1} parent=51 // pred_check
          %p1938 = pneg %p268
        $region82: #{tpu_custom_call.1} parent=51 // pred_check_branch
          %1940 = sbr.rel (%p1938) target = $region84
        $region83: #{tpu_custom_call.1} parent=51 // pred_region
          %s1941 = smul.u32 2, %s34
          %s1943 = ssub.s32 256, 256
          %1944 = vsyncadd [#allocation6], %s1943
          %s1945 = smul.addr %s1941, 128
          %s1946 = scalar_lea.hbm %s8, %s1945
          %s1947 = sshll.u32 [#allocation15], 4
          %s1948 = int_to_ptr.vmem [resolvable:$true] %s1947
          %1953 = dma.vmem_to_hbm [thread:$0]  %s1948, 256, %s1946, [#allocation6], 128, 128, 8
        $region84: #{tpu_custom_call.1} parent=51 // pred_fallthru
          _
        // Predicated region
        $region85: #{tpu_custom_call.1} parent=51 // pred_check
          %p1954 = pneg %p268
        $region86: #{tpu_custom_call.1} parent=51 // pred_check_branch
          %1956 = sbr.rel (%p1954) target = $region88
        $region87: #{tpu_custom_call.1} parent=51 // pred_region
          %1957 = dma.done [#allocation6], 256
        $region88: #{tpu_custom_call.1} parent=51 // pred_fallthru
          _
      $region52: #{tpu_custom_call.1} parent=5 // pred_fallthru
        _
      %p1958 = scmp.le.s32.totalorder 2, %s25
      // Predicated region
      $region89: #{tpu_custom_call.1} parent=5 // pred_check
        %p1959 = pneg %p1958
      $region90: #{tpu_custom_call.1} parent=5 // pred_check_branch
        %1961 = sbr.rel (%p1959) target = $region92
      $region91: #{tpu_custom_call.1} parent=5 // pred_region
        %s1962 = ssub.s32 %s25, 2
      $region92: #{tpu_custom_call.1} parent=5 // pred_fallthru
        _
    $region6: #{tpu_custom_call.1} parent=1 // loop_footer
      %s29 = sadd.s32 1, %s25
    $region7: #{tpu_custom_call.1} parent=1 // loop_footer_branch
      %24 = sbr.rel target = $region3
    $region8: #{tpu_custom_call.1} parent=1 // loop_exit
      _
    %1963 = vsyncpa [#allocation5], 1
    %s1964 = scalar_lea.sflag [#allocation5], 1
    %1965 = vsyncpa %s1964, 1
    %1966 = vsyncpa [#allocation8], 1
    %s1967 = scalar_lea.sflag [#allocation8], 1
    %1968 = vsyncpa %s1967, 1
    %1969 = vsyncpa [#allocation11], 1
    %s1970 = scalar_lea.sflag [#allocation11], 1
    %1971 = vsyncpa %s1970, 1
    %1972 = vsyncpa [#allocation14], 1
    %s1973 = scalar_lea.sflag [#allocation14], 1
    %1974 = vsyncpa %s1973, 1
    %1975 = vsyncpa [#allocation6], 1
    %s1976 = scalar_lea.sflag [#allocation6], 1
    %1977 = vsyncpa %s1976, 1

</llo_original>
